<compile_context>
chip_gen: v7x
topology: tpu7x:2x2x1
jax: 0.10.0
libtpu: 0.0.40
codegen_flags: <defaults>
</compile_context>

<pallas_src>
import functools

import jax
import jax.numpy as jnp
from jax.experimental import pallas as pl
from jax.experimental.pallas import tpu as pltpu


def _round_up(n, m):
    return ((n + m - 1) // m) * m


def _corr_sh_kernel(K, L, n_f, pad_cols, slope, noise_slope,
                    # inputs
                    x_ref, w1_ref, b1_ref, w2_ref, b2_ref,
                    wh_ref, bh_ref, wdec_ref, bdec_ref, noise_ref,
                    # outputs
                    small_ref, logw_ref,
                    # scratch
                    dec_in_ref, m_ref, l_ref):
    bf16 = jnp.bfloat16
    f32 = jnp.float32
    j = pl.program_id(1)                      # F-chunk / pass index

    # ---------- phase 0 (j == 0): encoder + heads + reparameterize + binarize
    @pl.when(j == 0)
    def _encode():
        x = x_ref[...]                        # (TB, F) bf16

        # encoder: Linear -> ReLU -> (Dropout=id) -> Linear -> ReLU -> (Dropout=id)
        h1 = jnp.maximum(
            jnp.dot(x, w1_ref[...], preferred_element_type=f32) + b1_ref[...],
            0.0)
        h = jnp.maximum(
            jnp.dot(h1.astype(bf16), w2_ref[...],
                    preferred_element_type=f32) + b2_ref[...],
            0.0)

        # fused heads: [mu | std_pre | U_0 .. U_{K-1}]  (one MXU pass)
        heads = (jnp.dot(h.astype(bf16), wh_ref[...],
                         preferred_element_type=f32) + bh_ref[...])

        mu = heads[:, 0 * L:1 * L]
        sp = heads[:, 1 * L:2 * L]
        # softplus with PyTorch's threshold=20 behavior; exp evaluated once.
        e = jnp.exp(jnp.minimum(sp, 20.0))
        std = jnp.where(sp > 20.0, sp, jnp.log1p(e))

        # rank-K factors: one tanh pass over the whole K*L block (hoisted).
        u_all = (1.0 / K) * jnp.tanh(heads[:, 2 * L:])        # (TB, K*L)

        # fused lane-dense noise slab: [eps1 | logit(u) | eps2 | eps_corr(bcast)]
        noi = noise_ref[...]
        eps1 = noi[:, 0 * L:1 * L]
        logit_u = noi[:, 1 * L:2 * L]
        eps2 = noi[:, 2 * L:3 * L]
        corr = jnp.zeros_like(mu)
        for i in range(K):                                    # K static & tiny
            corr = corr + u_all[:, i * L:(i + 1) * L] * noi[:, (3 + i) * L:(4 + i) * L]

        z = mu + eps1 * std + corr
        # TODO(synk): straightThrough is undefined in the source module; standard
        # stochastic sigmoid straight-through (forward):
        #   sigmoid(slope*z) > u  <=>  slope*z > logit(u).
        s = (slope * z > logit_u).astype(f32)

        # cache the decoder input across the F-chunk axis.
        dec_in_ref[...] = (s + eps2 * noise_slope).astype(bf16)

        # lane-dense packed small output: [s | mu | std | u_0..u_{K-1} | 0-pad]
        pieces = [s, mu, std, u_all]
        if pad_cols:
            pieces.append(jnp.zeros((s.shape[0], pad_cols), f32))
        small_ref[...] = jnp.concatenate(pieces, axis=1)

        if n_f > 1:                                           # init online LSE
            m_ref[...] = jnp.full(m_ref.shape, -jnp.inf, dtype=f32)
            l_ref[...] = jnp.zeros(l_ref.shape, dtype=f32)

    # ---------- decoder: logits for F-chunk (j % n_f) on every step
    logits = (jnp.dot(dec_in_ref[...], wdec_ref[...],
                      preferred_element_type=f32) + bdec_ref[...])   # (TB, TF)

    if n_f == 1:
        # single-chunk fast path: classic one-pass log-softmax.
        m = jnp.max(logits, axis=1, keepdims=True)
        lse = m + jnp.log(jnp.sum(jnp.exp(logits - m), axis=1, keepdims=True))
        logw_ref[...] = (logits - lse).astype(logw_ref.dtype)
    else:
        @pl.when(j < n_f)                      # pass 1: online max / sum-exp
        def _accumulate():
            m_prev = m_ref[...]
            m_new = jnp.maximum(m_prev, jnp.max(logits, axis=1, keepdims=True))
            l_ref[...] = (l_ref[...] * jnp.exp(m_prev - m_new)
                          + jnp.sum(jnp.exp(logits - m_new), axis=1,
                                    keepdims=True))
            m_ref[...] = m_new

        @pl.when(j >= n_f)                     # pass 2: normalize + store chunk
        def _emit():
            lse = m_ref[...] + jnp.log(l_ref[...])
            logw_ref[...] = (logits - lse).astype(logw_ref.dtype)


def corr_sh_forward(x, params, noise, *, slope=1.0, noise_slope=1.0,
                    logw_dtype=jnp.bfloat16):
    """Fused CorrSH forward. Returns (s, mu, std, u_pert, logprob_w)."""
    B, F = x.shape
    H = params["w1"].shape[1]
    L = params["wmu"].shape[1]
    K = params["wu"].shape[0]

    # ---- batch tiling: >=2 tiles when possible (v7x megacore), <=256 rows per
    #      tile, padding bounded to <8 rows/tile, x-tile bounded for huge F.
    n_b = max(1, -(-B // 256))
    if B >= 16:
        n_b = max(n_b, 2)
    TB = _round_up(-(-B // n_b), 8)
    max_tb = max(8, ((4 * 1024 * 1024) // max(2 * F, 1)) // 8 * 8)  # ~4MiB bf16 x tile
    TB = min(TB, max_tb)
    n_b = -(-B // TB)
    B_pad = n_b * TB

    # ---- vocab (decoder) chunking: lane-aligned, <=2048 lanes per chunk.
    TF = min(_round_up(F, 128), 2048)
    F_pad = _round_up(F, TF)
    n_f = F_pad // TF
    n_steps = n_f if n_f == 1 else 2 * n_f       # LSE pass + write pass

    HD = (2 + K) * L                             # fused heads width
    SM = (3 + K) * L                             # packed small-output width
    SMpad = _round_up(SM, 128)                   # lane-dense small output
    NW = _round_up((3 + K) * L, 128)             # fused noise slab width

    bf16, f32 = jnp.bfloat16, jnp.float32

    def pad_rows(a):
        if a.shape[0] == B_pad:
            return a
        return jnp.pad(a, [(0, B_pad - a.shape[0])] + [(0, 0)] * (a.ndim - 1))

    # bf16 MXU operands (weights pre-cast to halve DMA bytes), f32 biases.
    x_p = pad_rows(x).astype(bf16)
    w1 = params["w1"].astype(bf16)
    b1 = params["b1"].astype(f32)
    w2 = params["w2"].astype(bf16)
    b2 = params["b2"].astype(f32)
    w_heads = jnp.concatenate(
        [params["wmu"], params["wstd"]] + [params["wu"][i] for i in range(K)],
        axis=1).astype(bf16)
    b_heads = jnp.concatenate(
        [params["bmu"], params["bstd"]] + [params["bu"][i] for i in range(K)],
        axis=1).astype(f32)
    wdec = params["wdec"].astype(bf16)
    bdec = params["bdec"].astype(f32)
    if F_pad != F:
        wdec = jnp.pad(wdec, ((0, 0), (0, F_pad - F)))
        # very negative bias so padded vocab columns vanish from the softmax.
        bdec = jnp.pad(bdec, ((0, 0), (0, F_pad - F)), constant_values=-1e9)

    # fused lane-dense noise slab: [eps1 | logit(u) | eps2 | eps_corr bcast | 0-pad]
    logit_u = jnp.log(noise["u_st"]) - jnp.log1p(-noise["u_st"])
    eps_corr_b = jnp.repeat(noise["eps_corr"], L, axis=1)           # (B, K*L)
    slab = jnp.concatenate(
        [noise["eps1"], logit_u, noise["eps2"], eps_corr_b], axis=1).astype(f32)
    if slab.shape[1] != NW:
        slab = jnp.pad(slab, ((0, 0), (0, NW - slab.shape[1])))
    slab = pad_rows(slab)

    inputs = (x_p, w1, b1, w2, b2, w_heads, b_heads, wdec, bdec, slab)

    kernel = functools.partial(_corr_sh_kernel, K, L, n_f, SMpad - SM,
                               float(slope), float(noise_slope))

    # advisory cost estimate (decoder matmul counted twice for the 2-pass LSE)
    dec_passes = 2 if n_f > 1 else 1
    flops = 2 * B_pad * (F * H + H * H + H * HD) + dec_passes * 2 * B_pad * L * F_pad
    transcend = B_pad * ((2 + K) * L + dec_passes * F_pad)
    bytes_acc = (sum(int(a.size) * a.dtype.itemsize for a in inputs)
                 + B_pad * SMpad * 4
                 + B_pad * F_pad * jnp.dtype(logw_dtype).itemsize)

    # per-generation VMEM cap (~48 MiB on v7x, up to ~96 MiB on v5e/v6e).
    try:
        phys_vmem = int(pltpu.get_tpu_info().vmem_capacity_bytes)
    except Exception:
        phys_vmem = 64 * 1024 * 1024
    vmem_cap = (3 * phys_vmem) // 4

    def run(single_buffer_weights):
        const_kw = {}
        if single_buffer_weights:
            # resident weights are fetched once: single buffer, half the VMEM.
            const_kw = dict(pipeline_mode=pl.Buffered(1))

        def const_spec(shape):
            return pl.BlockSpec(shape, lambda i, j: (0, 0), **const_kw)

        def row_spec(width):
            return pl.BlockSpec((TB, width), lambda i, j: (i, 0))

        in_specs = [
            row_spec(F),                                      # x
            const_spec((F, H)), const_spec((1, H)),           # w1, b1
            const_spec((H, H)), const_spec((1, H)),           # w2, b2
            const_spec((H, HD)), const_spec((1, HD)),         # fused heads
            pl.BlockSpec((L, TF), lambda i, j: (0, j % n_f)),  # wdec chunk
            pl.BlockSpec((1, TF), lambda i, j: (0, j % n_f)),  # bdec chunk
            row_spec(NW),                                     # fused noise slab
        ]
        out_specs = (
            pl.BlockSpec((TB, SMpad), lambda i, j: (i, 0)),   # packed small out
            pl.BlockSpec((TB, TF),                            # logw chunk:
                         lambda i, j: (i, jnp.maximum(j - n_f, 0))),
        )
        out_shapes = (jax.ShapeDtypeStruct((B_pad, SMpad), f32),
                      jax.ShapeDtypeStruct((B_pad, F_pad), logw_dtype))

        wbuf = 1 if single_buffer_weights else 2
        itemw = jnp.dtype(logw_dtype).itemsize
        vmem_est = int(
            2 * TB * F * 2                                    # x (double buffered, bf16)
            + wbuf * ((F * H + H * H + H * HD) * 2 + (2 * H + HD) * 4)
            + 2 * (L * TF * 2 + TF * 4)                       # wdec/bdec chunks
            + 2 * TB * NW * 4 + 2 * TB * SMpad * 4            # noise slab, small out
            + 2 * TB * TF * itemw + 2 * TB * TF * 4           # logw out + f32 logits
            + TB * (2 * L + 8) + (2 << 20))                   # scratch + headroom
        vmem_limit = int(min(vmem_cap, max(32 * 1024 * 1024, vmem_est)))

        return pl.pallas_call(
            kernel,
            grid=(n_b, n_steps),
            in_specs=in_specs,
            out_specs=out_specs,
            out_shape=out_shapes,
            scratch_shapes=[
                pltpu.VMEM((TB, L), bf16),    # cached decoder input (s + noise)
                pltpu.VMEM((TB, 1), f32),     # running max
                pltpu.VMEM((TB, 1), f32),     # running sum of exp
            ],
            compiler_params=pltpu.CompilerParams(
                dimension_semantics=("parallel", "arbitrary"),
                vmem_limit_bytes=vmem_limit),
            cost_estimate=pl.CostEstimate(
                flops=flops, transcendentals=transcend,
                bytes_accessed=bytes_acc),
        )(*inputs)

    try:
        small, logw = run(single_buffer_weights=True)
    except Exception:
        # pl.Buffered(1) not accepted by this jax/libtpu -> default pipeline.
        small, logw = run(single_buffer_weights=False)

    # Unpack [s | mu | std | u_0..u_{K-1}] and drop batch / vocab padding.
    s = small[:B, 0 * L:1 * L]
    mu = small[:B, 1 * L:2 * L]
    std = small[:B, 2 * L:3 * L]
    u_pert = small[:B, 3 * L:SM].reshape(B, K, L).transpose(0, 2, 1)   # (B, L, K)
    return s, mu, std, u_pert, logw[:B, :F]


def _init_linear(key, in_dim, out_dim):
    """PyTorch nn.Linear default init: U(-1/sqrt(fan_in), 1/sqrt(fan_in))."""
    kw, kb = jax.random.split(key)
    bound = 1.0 / (in_dim ** 0.5)
    w = jax.random.uniform(kw, (in_dim, out_dim), jnp.float32, -bound, bound)
    b = jax.random.uniform(kb, (1, out_dim), jnp.float32, -bound, bound)
    return w, b


if __name__ == "__main__":
    # small, shape-consistent config: batch=8 docs, feature_dim=128,
    # hidden_dim=64, latent_dim=16, rank=1
    B, F, H, L, K = 8, 128, 64, 16, 1
    slope, noise_slope = 1.0, 1.0

    root = jax.random.PRNGKey(0)
    keys = jax.random.split(root, 12)

    w1, b1 = _init_linear(keys[0], F, H)
    w2, b2 = _init_linear(keys[1], H, H)
    wmu, bmu = _init_linear(keys[2], H, L)
    wstd, bstd = _init_linear(keys[3], H, L)
    ku = jax.random.split(keys[4], K)
    wu = jnp.stack([_init_linear(ku[i], H, L)[0] for i in range(K)], 0)   # (K, H, L)
    bu = jnp.stack([_init_linear(ku[i], H, L)[1] for i in range(K)], 0)   # (K, 1, L)
    wdec, bdec = _init_linear(keys[5], L, F)

    params = dict(w1=w1, b1=b1, w2=w2, b2=b2, wmu=wmu, bmu=bmu,
                  wstd=wstd, bstd=bstd, wu=wu, bu=bu, wdec=wdec, bdec=bdec)

    x = jax.random.uniform(keys[6], (B, F), jnp.float32)               # doc matrix
    noise = dict(
        eps1=jax.random.normal(keys[7], (B, L), jnp.float32),          # randn_like(mu)
        eps_corr=jax.random.normal(keys[8], (B, K), jnp.float32),      # randn((B,k,1)) squeezed
        u_st=jax.random.uniform(keys[9], (B, L), jnp.float32,
                                minval=1e-6, maxval=1.0 - 1e-6),       # straight-through uniform
        eps2=jax.random.normal(keys[10], (B, L), jnp.float32),         # decoder noise
    )

    outs = corr_sh_forward(x, params, noise, slope=slope, noise_slope=noise_slope)
    outs = jax.block_until_ready(outs)
    s, mu, std, u_pert, logprob_w = outs

    assert s.shape == (B, L) and mu.shape == (B, L) and std.shape == (B, L)
    assert u_pert.shape == (B, L, K) and logprob_w.shape == (B, F)

    # ---- pure-JAX f32 reference (same noise) for a tolerance check ----------
    h1_r = jax.nn.relu(x @ w1 + b1)
    h_r = jax.nn.relu(h1_r @ w2 + b2)
    mu_r = h_r @ wmu + bmu
    std_r = jax.nn.softplus(h_r @ wstd + bstd)
    u_r = jnp.stack([(1.0 / K) * jnp.tanh(h_r @ wu[i] + bu[i])
                     for i in range(K)], axis=2)                        # (B, L, K)
    z_r = mu_r + noise["eps1"] * std_r + jnp.einsum("blk,bk->bl", u_r,
                                                    noise["eps_corr"])
    s_r = (jax.nn.sigmoid(slope * z_r) > noise["u_st"]).astype(jnp.float32)

    tol = dict(atol=8e-2, rtol=8e-2)
    assert bool(jnp.allclose(mu, mu_r, **tol))
    assert bool(jnp.allclose(std, std_r, **tol))
    assert bool(jnp.allclose(u_pert, u_r, **tol))
    # binary code must agree wherever the stochastic threshold is not borderline.
    logit_u_r = jnp.log(noise["u_st"]) - jnp.log1p(-noise["u_st"])
    safe = jnp.abs(slope * z_r - logit_u_r) > 0.1
    assert bool(jnp.all(jnp.where(safe, s == s_r, True)))
    assert bool(jnp.all((s == 0.0) | (s == 1.0)))
    # logprob_w rows must be valid log-probabilities and finite.
    logw_f32 = logprob_w.astype(jnp.float32)
    assert bool(jnp.all(jnp.isfinite(logw_f32)))
    assert bool(jnp.all(jnp.abs(jnp.sum(jnp.exp(logw_f32), axis=1) - 1.0) < 5e-2))

    print("KERNEL_OK")
</pallas_src>

<mosaic_0001>
module attributes {stable_mosaic.version = 11 : i64} {
  func.func @_corr_sh_kernel(%arg0: i32, %arg1: i32, %arg2: memref<8x128xbf16, #tpu.memory_space<vmem>>, %arg3: memref<128x64xbf16, #tpu.memory_space<vmem>>, %arg4: memref<1x64xf32, #tpu.memory_space<vmem>>, %arg5: memref<64x64xbf16, #tpu.memory_space<vmem>>, %arg6: memref<1x64xf32, #tpu.memory_space<vmem>>, %arg7: memref<64x48xbf16, #tpu.memory_space<vmem>>, %arg8: memref<1x48xf32, #tpu.memory_space<vmem>>, %arg9: memref<16x128xbf16, #tpu.memory_space<vmem>>, %arg10: memref<1x128xf32, #tpu.memory_space<vmem>>, %arg11: memref<8x128xf32, #tpu.memory_space<vmem>>, %arg12: memref<8x128xf32, #tpu.memory_space<vmem>>, %arg13: memref<8x128xbf16, #tpu.memory_space<vmem>>, %arg14: memref<8x16xbf16, #tpu.memory_space<vmem>>, %arg15: memref<8x1xf32, #tpu.memory_space<vmem>>, %arg16: memref<8x1xf32, #tpu.memory_space<vmem>>) attributes {dimension_semantics = [#tpu.dimension_semantics<parallel>, #tpu.dimension_semantics<arbitrary>], iteration_bounds = array<i64: 1, 1>, scalar_prefetch = 0 : i64, scratch_operands = 3 : i64, tpu.core_type = #tpu.core_type<tc>, window_params = [{transform_indices = @transform_0, window_bounds = array<i64: 8, 128>}, {pipeline_mode = #tpu.pipeline_mode<synchronous>, transform_indices = @transform_1, window_bounds = array<i64: 128, 64>}, {pipeline_mode = #tpu.pipeline_mode<synchronous>, transform_indices = @transform_2, window_bounds = array<i64: 1, 64>}, {pipeline_mode = #tpu.pipeline_mode<synchronous>, transform_indices = @transform_3, window_bounds = array<i64: 64, 64>}, {pipeline_mode = #tpu.pipeline_mode<synchronous>, transform_indices = @transform_4, window_bounds = array<i64: 1, 64>}, {pipeline_mode = #tpu.pipeline_mode<synchronous>, transform_indices = @transform_5, window_bounds = array<i64: 64, 48>}, {pipeline_mode = #tpu.pipeline_mode<synchronous>, transform_indices = @transform_6, window_bounds = array<i64: 1, 48>}, {transform_indices = @transform_7, window_bounds = array<i64: 16, 128>}, {transform_indices = @transform_8, window_bounds = array<i64: 1, 128>}, {transform_indices = @transform_9, window_bounds = array<i64: 8, 128>}, {transform_indices = @transform_10, window_bounds = array<i64: 8, 128>}, {transform_indices = @transform_11, window_bounds = array<i64: 8, 128>}]} {
    %c0_i32 = arith.constant 0 : i32
    %0 = arith.cmpi eq, %arg1, %c0_i32 : i32
    %1 = arith.extui %0 : i1 to i32
    %c0_i32_0 = arith.constant 0 : i32
    %2 = arith.cmpi ne, %1, %c0_i32_0 : i32
    scf.if %2 {
      %c0_10 = arith.constant 0 : index
      %c0_11 = arith.constant 0 : index
      %22 = vector.load %arg2[%c0_10, %c0_11] : memref<8x128xbf16, #tpu.memory_space<vmem>>, vector<8x128xbf16>
      %c0_12 = arith.constant 0 : index
      %c0_13 = arith.constant 0 : index
      %23 = vector.load %arg3[%c0_12, %c0_13] : memref<128x64xbf16, #tpu.memory_space<vmem>>, vector<128x64xbf16>
      %cst_14 = arith.constant dense<0.000000e+00> : vector<8x64xf32>
      %24 = tpu.matmul %22, %23, %cst_14 {dimension_numbers = #tpu.dot_dimension_numbers<[1], [0], [0], [1], [0, 0, 1, 1], [], []>} : vector<8x128xbf16>, vector<128x64xbf16>, vector<8x64xf32> -> vector<8x64xf32>
      %c0_15 = arith.constant 0 : index
      %c0_16 = arith.constant 0 : index
      %25 = vector.load %arg4[%c0_15, %c0_16] : memref<1x64xf32, #tpu.memory_space<vmem>>, vector<1x64xf32>
      %26 = vector.broadcast %25 : vector<1x64xf32> to vector<8x64xf32>
      %27 = arith.addf %24, %26 : vector<8x64xf32>
      %cst_17 = arith.constant 0.000000e+00 : f32
      %28 = vector.broadcast %cst_17 : f32 to vector<8x64xf32>
      %29 = arith.maximumf %27, %28 : vector<8x64xf32>
      %30 = arith.truncf %29 : vector<8x64xf32> to vector<8x64xbf16>
      %c0_18 = arith.constant 0 : index
      %c0_19 = arith.constant 0 : index
      %31 = vector.load %arg5[%c0_18, %c0_19] : memref<64x64xbf16, #tpu.memory_space<vmem>>, vector<64x64xbf16>
      %cst_20 = arith.constant dense<0.000000e+00> : vector<8x64xf32>
      %32 = tpu.matmul %30, %31, %cst_20 {dimension_numbers = #tpu.dot_dimension_numbers<[1], [0], [0], [1], [0, 0, 1, 1], [], []>} : vector<8x64xbf16>, vector<64x64xbf16>, vector<8x64xf32> -> vector<8x64xf32>
      %c0_21 = arith.constant 0 : index
      %c0_22 = arith.constant 0 : index
      %33 = vector.load %arg6[%c0_21, %c0_22] : memref<1x64xf32, #tpu.memory_space<vmem>>, vector<1x64xf32>
      %34 = vector.broadcast %33 : vector<1x64xf32> to vector<8x64xf32>
      %35 = arith.addf %32, %34 : vector<8x64xf32>
      %cst_23 = arith.constant 0.000000e+00 : f32
      %36 = vector.broadcast %cst_23 : f32 to vector<8x64xf32>
      %37 = arith.maximumf %35, %36 : vector<8x64xf32>
      %38 = arith.truncf %37 : vector<8x64xf32> to vector<8x64xbf16>
      %c0_24 = arith.constant 0 : index
      %c0_25 = arith.constant 0 : index
      %39 = vector.load %arg7[%c0_24, %c0_25] : memref<64x48xbf16, #tpu.memory_space<vmem>>, vector<64x48xbf16>
      %cst_26 = arith.constant dense<0.000000e+00> : vector<8x48xf32>
      %40 = tpu.matmul %38, %39, %cst_26 {dimension_numbers = #tpu.dot_dimension_numbers<[1], [0], [0], [1], [0, 0, 1, 1], [], []>} : vector<8x64xbf16>, vector<64x48xbf16>, vector<8x48xf32> -> vector<8x48xf32>
      %c0_27 = arith.constant 0 : index
      %c0_28 = arith.constant 0 : index
      %41 = vector.load %arg8[%c0_27, %c0_28] : memref<1x48xf32, #tpu.memory_space<vmem>>, vector<1x48xf32>
      %42 = vector.broadcast %41 : vector<1x48xf32> to vector<8x48xf32>
      %43 = arith.addf %40, %42 : vector<8x48xf32>
      %44 = vector.extract_strided_slice %43 {offsets = [0, 0], sizes = [8, 16], strides = [1, 1]} : vector<8x48xf32> to vector<8x16xf32>
      %45 = vector.extract_strided_slice %43 {offsets = [0, 16], sizes = [8, 16], strides = [1, 1]} : vector<8x48xf32> to vector<8x16xf32>
      %cst_29 = arith.constant 2.000000e+01 : f32
      %46 = vector.broadcast %cst_29 : f32 to vector<8x16xf32>
      %47 = arith.minimumf %45, %46 : vector<8x16xf32>
      %48 = math.exp %47 : vector<8x16xf32>
      %cst_30 = arith.constant 2.000000e+01 : f32
      %49 = vector.broadcast %cst_30 : f32 to vector<8x16xf32>
      %50 = arith.cmpf ogt, %45, %49 : vector<8x16xf32>
      %51 = math.log1p %48 : vector<8x16xf32>
      %52 = arith.select %50, %45, %51 : vector<8x16xi1>, vector<8x16xf32>
      %53 = vector.extract_strided_slice %43 {offsets = [0, 32], sizes = [8, 16], strides = [1, 1]} : vector<8x48xf32> to vector<8x16xf32>
      %54 = math.tanh %53 : vector<8x16xf32>
      %cst_31 = arith.constant 1.000000e+00 : f32
      %55 = vector.broadcast %cst_31 : f32 to vector<8x16xf32>
      %56 = arith.mulf %55, %54 : vector<8x16xf32>
      %c0_32 = arith.constant 0 : index
      %c0_33 = arith.constant 0 : index
      %57 = vector.load %arg11[%c0_32, %c0_33] : memref<8x128xf32, #tpu.memory_space<vmem>>, vector<8x128xf32>
      %58 = vector.extract_strided_slice %57 {offsets = [0, 0], sizes = [8, 16], strides = [1, 1]} : vector<8x128xf32> to vector<8x16xf32>
      %59 = vector.extract_strided_slice %57 {offsets = [0, 16], sizes = [8, 16], strides = [1, 1]} : vector<8x128xf32> to vector<8x16xf32>
      %60 = vector.extract_strided_slice %57 {offsets = [0, 32], sizes = [8, 16], strides = [1, 1]} : vector<8x128xf32> to vector<8x16xf32>
      %cst_34 = arith.constant 0.000000e+00 : f32
      %61 = vector.broadcast %cst_34 : f32 to vector<8x16xf32>
      %62 = vector.extract_strided_slice %57 {offsets = [0, 48], sizes = [8, 16], strides = [1, 1]} : vector<8x128xf32> to vector<8x16xf32>
      %63 = arith.mulf %56, %62 : vector<8x16xf32>
      %64 = arith.addf %61, %63 : vector<8x16xf32>
      %65 = arith.mulf %58, %52 : vector<8x16xf32>
      %66 = arith.addf %44, %65 : vector<8x16xf32>
      %67 = arith.addf %66, %64 : vector<8x16xf32>
      %cst_35 = arith.constant 1.000000e+00 : f32
      %68 = vector.broadcast %cst_35 : f32 to vector<8x16xf32>
      %69 = arith.mulf %68, %67 : vector<8x16xf32>
      %70 = arith.cmpf ogt, %69, %59 : vector<8x16xf32>
      %71 = arith.extui %70 : vector<8x16xi1> to vector<8x16xi32>
      %72 = arith.sitofp %71 : vector<8x16xi32> to vector<8x16xf32>
      %cst_36 = arith.constant 1.000000e+00 : f32
      %73 = vector.broadcast %cst_36 : f32 to vector<8x16xf32>
      %74 = arith.mulf %60, %73 : vector<8x16xf32>
      %75 = arith.addf %72, %74 : vector<8x16xf32>
      %76 = arith.truncf %75 : vector<8x16xf32> to vector<8x16xbf16>
      %c0_37 = arith.constant 0 : index
      %c0_38 = arith.constant 0 : index
      %77 = vector.load %arg14[%c0_37, %c0_38] : memref<8x16xbf16, #tpu.memory_space<vmem>>, vector<8x16xbf16>
      tpu.vector_store %arg14[%c0_37, %c0_38], %76 {strides = array<i32>} : memref<8x16xbf16, #tpu.memory_space<vmem>>, vector<8x16xbf16>,
      %cst_39 = arith.constant 0.000000e+00 : f32
      %78 = vector.broadcast %cst_39 : f32 to vector<8x64xf32>
      %79 = tpu.concatenate %72, %44, %52, %56, %78 in 1 : vector<8x16xf32>, vector<8x16xf32>, vector<8x16xf32>, vector<8x16xf32>, vector<8x64xf32> -> vector<8x128xf32>
      %c0_40 = arith.constant 0 : index
      %c0_41 = arith.constant 0 : index
      %80 = vector.load %arg12[%c0_40, %c0_41] : memref<8x128xf32, #tpu.memory_space<vmem>>, vector<8x128xf32>
      tpu.vector_store %arg12[%c0_40, %c0_41], %79 {strides = array<i32>} : memref<8x128xf32, #tpu.memory_space<vmem>>, vector<8x128xf32>,
    } else {
    }
    %c0 = arith.constant 0 : index
    %c0_1 = arith.constant 0 : index
    %3 = vector.load %arg14[%c0, %c0_1] : memref<8x16xbf16, #tpu.memory_space<vmem>>, vector<8x16xbf16>
    %c0_2 = arith.constant 0 : index
    %c0_3 = arith.constant 0 : index
    %4 = vector.load %arg9[%c0_2, %c0_3] : memref<16x128xbf16, #tpu.memory_space<vmem>>, vector<16x128xbf16>
    %cst = arith.constant dense<0.000000e+00> : vector<8x128xf32>
    %5 = tpu.matmul %3, %4, %cst {dimension_numbers = #tpu.dot_dimension_numbers<[1], [0], [0], [1], [0, 0, 1, 1], [], []>} : vector<8x16xbf16>, vector<16x128xbf16>, vector<8x128xf32> -> vector<8x128xf32>
    %c0_4 = arith.constant 0 : index
    %c0_5 = arith.constant 0 : index
    %6 = vector.load %arg10[%c0_4, %c0_5] : memref<1x128xf32, #tpu.memory_space<vmem>>, vector<1x128xf32>
    %7 = vector.broadcast %6 : vector<1x128xf32> to vector<8x128xf32>
    %8 = arith.addf %5, %7 : vector<8x128xf32>
    %cst_6 = arith.constant dense<0xFF800000> : vector<8xf32>
    %9 = vector.multi_reduction <maximumf>, %8, %cst_6 [1] : vector<8x128xf32> to vector<8xf32>
    %10 = vector.shape_cast %9 : vector<8xf32> to vector<8x1xf32>
    %11 = vector.broadcast %10 : vector<8x1xf32> to vector<8x128xf32>
    %12 = arith.subf %8, %11 : vector<8x128xf32>
    %13 = math.exp %12 : vector<8x128xf32>
    %cst_7 = arith.constant dense<0.000000e+00> : vector<8xf32>
    %14 = vector.multi_reduction <add>, %13, %cst_7 [1] : vector<8x128xf32> to vector<8xf32>
    %15 = vector.shape_cast %14 : vector<8xf32> to vector<8x1xf32>
    %16 = math.log %15 : vector<8x1xf32>
    %17 = arith.addf %10, %16 : vector<8x1xf32>
    %18 = vector.broadcast %17 : vector<8x1xf32> to vector<8x128xf32>
    %19 = arith.subf %8, %18 : vector<8x128xf32>
    %20 = arith.truncf %19 : vector<8x128xf32> to vector<8x128xbf16>
    %c0_8 = arith.constant 0 : index
    %c0_9 = arith.constant 0 : index
    %21 = vector.load %arg13[%c0_8, %c0_9] : memref<8x128xbf16, #tpu.memory_space<vmem>>, vector<8x128xbf16>
    tpu.vector_store %arg13[%c0_8, %c0_9], %20 {strides = array<i32>} : memref<8x128xbf16, #tpu.memory_space<vmem>>, vector<8x128xbf16>,
    return
  }
  func.func @transform_0(%arg0: i32, %arg1: i32) -> (i32, i32) {
    %c0_i32 = arith.constant 0 : i32
    %c0_i32_0 = arith.constant 0 : i32
    return %arg0, %c0_i32 : i32, i32
  }
  func.func @transform_1(%arg0: i32, %arg1: i32) -> (i32, i32) {
    %c0_i32 = arith.constant 0 : i32
    %c0_i32_0 = arith.constant 0 : i32
    %c0_i32_1 = arith.constant 0 : i32
    return %c0_i32, %c0_i32_0 : i32, i32
  }
  func.func @transform_2(%arg0: i32, %arg1: i32) -> (i32, i32) {
    %c0_i32 = arith.constant 0 : i32
    %c0_i32_0 = arith.constant 0 : i32
    %c0_i32_1 = arith.constant 0 : i32
    return %c0_i32, %c0_i32_0 : i32, i32
  }
  func.func @transform_3(%arg0: i32, %arg1: i32) -> (i32, i32) {
    %c0_i32 = arith.constant 0 : i32
    %c0_i32_0 = arith.constant 0 : i32
    %c0_i32_1 = arith.constant 0 : i32
    return %c0_i32, %c0_i32_0 : i32, i32
  }
  func.func @transform_4(%arg0: i32, %arg1: i32) -> (i32, i32) {
    %c0_i32 = arith.constant 0 : i32
    %c0_i32_0 = arith.constant 0 : i32
    %c0_i32_1 = arith.constant 0 : i32
    return %c0_i32, %c0_i32_0 : i32, i32
  }
  func.func @transform_5(%arg0: i32, %arg1: i32) -> (i32, i32) {
    %c0_i32 = arith.constant 0 : i32
    %c0_i32_0 = arith.constant 0 : i32
    %c0_i32_1 = arith.constant 0 : i32
    return %c0_i32, %c0_i32_0 : i32, i32
  }
  func.func @transform_6(%arg0: i32, %arg1: i32) -> (i32, i32) {
    %c0_i32 = arith.constant 0 : i32
    %c0_i32_0 = arith.constant 0 : i32
    %c0_i32_1 = arith.constant 0 : i32
    return %c0_i32, %c0_i32_0 : i32, i32
  }
  func.func @transform_7(%arg0: i32, %arg1: i32) -> (i32, i32) {
    %c1_i32 = arith.constant 1 : i32
    %c0_i32 = arith.constant 0 : i32
    %0 = arith.cmpi eq, %c1_i32, %c0_i32 : i32
    %c1_i32_0 = arith.constant 1 : i32
    %1 = arith.select %0, %c1_i32_0, %c1_i32 : i32
    %2 = arith.remsi %arg1, %1 : i32
    %c0_i32_1 = arith.constant 0 : i32
    %3 = arith.cmpi ne, %2, %c0_i32_1 : i32
    %c0_i32_2 = arith.constant 0 : i32
    %4 = arith.cmpi slt, %2, %c0_i32_2 : i32
    %c0_i32_3 = arith.constant 0 : i32
    %5 = arith.cmpi slt, %1, %c0_i32_3 : i32
    %6 = arith.xori %4, %5 : i1
    %7 = arith.andi %6, %3 : i1
    %8 = arith.addi %2, %1 : i32
    %9 = arith.select %7, %8, %2 : i32
    %c0_i32_4 = arith.constant 0 : i32
    %c0_i32_5 = arith.constant 0 : i32
    return %c0_i32_4, %9 : i32, i32
  }
  func.func @transform_8(%arg0: i32, %arg1: i32) -> (i32, i32) {
    %c1_i32 = arith.constant 1 : i32
    %c0_i32 = arith.constant 0 : i32
    %0 = arith.cmpi eq, %c1_i32, %c0_i32 : i32
    %c1_i32_0 = arith.constant 1 : i32
    %1 = arith.select %0, %c1_i32_0, %c1_i32 : i32
    %2 = arith.remsi %arg1, %1 : i32
    %c0_i32_1 = arith.constant 0 : i32
    %3 = arith.cmpi ne, %2, %c0_i32_1 : i32
    %c0_i32_2 = arith.constant 0 : i32
    %4 = arith.cmpi slt, %2, %c0_i32_2 : i32
    %c0_i32_3 = arith.constant 0 : i32
    %5 = arith.cmpi slt, %1, %c0_i32_3 : i32
    %6 = arith.xori %4, %5 : i1
    %7 = arith.andi %6, %3 : i1
    %8 = arith.addi %2, %1 : i32
    %9 = arith.select %7, %8, %2 : i32
    %c0_i32_4 = arith.constant 0 : i32
    %c0_i32_5 = arith.constant 0 : i32
    return %c0_i32_4, %9 : i32, i32
  }
  func.func @transform_9(%arg0: i32, %arg1: i32) -> (i32, i32) {
    %c0_i32 = arith.constant 0 : i32
    %c0_i32_0 = arith.constant 0 : i32
    return %arg0, %c0_i32 : i32, i32
  }
  func.func @transform_10(%arg0: i32, %arg1: i32) -> (i32, i32) {
    %c0_i32 = arith.constant 0 : i32
    %c0_i32_0 = arith.constant 0 : i32
    return %arg0, %c0_i32 : i32, i32
  }
  func.func @transform_11(%arg0: i32, %arg1: i32) -> (i32, i32) {
    %c1_i32 = arith.constant 1 : i32
    %0 = arith.subi %arg1, %c1_i32 : i32
    %c0_i32 = arith.constant 0 : i32
    %1 = arith.maxsi %0, %c0_i32 : i32
    %c0_i32_0 = arith.constant 0 : i32
    return %arg0, %1 : i32, i32
  }
}

module attributes {stable_mosaic.version = 11 : i64} {
  func.func @_corr_sh_kernel(%arg0: i32, %arg1: i32, %arg2: memref<8x128xbf16, #tpu.memory_space<vmem>>, %arg3: memref<128x64xbf16, #tpu.memory_space<vmem>>, %arg4: memref<1x64xf32, #tpu.memory_space<vmem>>, %arg5: memref<64x64xbf16, #tpu.memory_space<vmem>>, %arg6: memref<1x64xf32, #tpu.memory_space<vmem>>, %arg7: memref<64x48xbf16, #tpu.memory_space<vmem>>, %arg8: memref<1x48xf32, #tpu.memory_space<vmem>>, %arg9: memref<16x128xbf16, #tpu.memory_space<vmem>>, %arg10: memref<1x128xf32, #tpu.memory_space<vmem>>, %arg11: memref<8x128xf32, #tpu.memory_space<vmem>>, %arg12: memref<8x128xf32, #tpu.memory_space<vmem>>, %arg13: memref<8x128xbf16, #tpu.memory_space<vmem>>, %arg14: memref<8x16xbf16, #tpu.memory_space<vmem>>, %arg15: memref<8x1xf32, #tpu.memory_space<vmem>>, %arg16: memref<8x1xf32, #tpu.memory_space<vmem>>) attributes {dimension_semantics = [#tpu.dimension_semantics<parallel>, #tpu.dimension_semantics<arbitrary>], iteration_bounds = array<i64: 1, 1>, scalar_prefetch = 0 : i64, scratch_operands = 3 : i64, tpu.core_type = #tpu.core_type<tc>, window_params = [{transform_indices = @transform_0, window_bounds = array<i64: 8, 128>}, {pipeline_mode = #tpu.pipeline_mode<synchronous>, transform_indices = @transform_1, window_bounds = array<i64: 128, 64>}, {pipeline_mode = #tpu.pipeline_mode<synchronous>, transform_indices = @transform_2, window_bounds = array<i64: 1, 64>}, {pipeline_mode = #tpu.pipeline_mode<synchronous>, transform_indices = @transform_3, window_bounds = array<i64: 64, 64>}, {pipeline_mode = #tpu.pipeline_mode<synchronous>, transform_indices = @transform_4, window_bounds = array<i64: 1, 64>}, {pipeline_mode = #tpu.pipeline_mode<synchronous>, transform_indices = @transform_5, window_bounds = array<i64: 64, 48>}, {pipeline_mode = #tpu.pipeline_mode<synchronous>, transform_indices = @transform_6, window_bounds = array<i64: 1, 48>}, {transform_indices = @transform_7, window_bounds = array<i64: 16, 128>}, {transform_indices = @transform_8, window_bounds = array<i64: 1, 128>}, {transform_indices = @transform_9, window_bounds = array<i64: 8, 128>}, {transform_indices = @transform_10, window_bounds = array<i64: 8, 128>}, {transform_indices = @transform_11, window_bounds = array<i64: 8, 128>}]} {
    %c0_i32 = arith.constant 0 : i32
    %0 = arith.cmpi eq, %arg1, %c0_i32 : i32
    %1 = arith.extui %0 : i1 to i32
    %c0_i32_0 = arith.constant 0 : i32
    %2 = arith.cmpi ne, %1, %c0_i32_0 : i32
    scf.if %2 {
      %c0_10 = arith.constant 0 : index
      %c0_11 = arith.constant 0 : index
      %22 = vector.load %arg2[%c0_10, %c0_11] : memref<8x128xbf16, #tpu.memory_space<vmem>>, vector<8x128xbf16>
      %c0_12 = arith.constant 0 : index
      %c0_13 = arith.constant 0 : index
      %23 = vector.load %arg3[%c0_12, %c0_13] : memref<128x64xbf16, #tpu.memory_space<vmem>>, vector<128x64xbf16>
      %cst_14 = arith.constant dense<0.000000e+00> : vector<8x64xf32>
      %24 = tpu.matmul %22, %23, %cst_14 {dimension_numbers = #tpu.dot_dimension_numbers<[1], [0], [0], [1], [0, 0, 1, 1], [], []>} : vector<8x128xbf16>, vector<128x64xbf16>, vector<8x64xf32> -> vector<8x64xf32>
      %c0_15 = arith.constant 0 : index
      %c0_16 = arith.constant 0 : index
      %25 = vector.load %arg4[%c0_15, %c0_16] : memref<1x64xf32, #tpu.memory_space<vmem>>, vector<1x64xf32>
      %26 = vector.broadcast %25 : vector<1x64xf32> to vector<8x64xf32>
      %27 = arith.addf %24, %26 : vector<8x64xf32>
      %cst_17 = arith.constant 0.000000e+00 : f32
      %28 = vector.broadcast %cst_17 : f32 to vector<8x64xf32>
      %29 = arith.maximumf %27, %28 : vector<8x64xf32>
      %30 = arith.truncf %29 : vector<8x64xf32> to vector<8x64xbf16>
      %c0_18 = arith.constant 0 : index
      %c0_19 = arith.constant 0 : index
      %31 = vector.load %arg5[%c0_18, %c0_19] : memref<64x64xbf16, #tpu.memory_space<vmem>>, vector<64x64xbf16>
      %cst_20 = arith.constant dense<0.000000e+00> : vector<8x64xf32>
      %32 = tpu.matmul %30, %31, %cst_20 {dimension_numbers = #tpu.dot_dimension_numbers<[1], [0], [0], [1], [0, 0, 1, 1], [], []>} : vector<8x64xbf16>, vector<64x64xbf16>, vector<8x64xf32> -> vector<8x64xf32>
      %c0_21 = arith.constant 0 : index
      %c0_22 = arith.constant 0 : index
      %33 = vector.load %arg6[%c0_21, %c0_22] : memref<1x64xf32, #tpu.memory_space<vmem>>, vector<1x64xf32>
      %34 = vector.broadcast %33 : vector<1x64xf32> to vector<8x64xf32>
      %35 = arith.addf %32, %34 : vector<8x64xf32>
      %cst_23 = arith.constant 0.000000e+00 : f32
      %36 = vector.broadcast %cst_23 : f32 to vector<8x64xf32>
      %37 = arith.maximumf %35, %36 : vector<8x64xf32>
      %38 = arith.truncf %37 : vector<8x64xf32> to vector<8x64xbf16>
      %c0_24 = arith.constant 0 : index
      %c0_25 = arith.constant 0 : index
      %39 = vector.load %arg7[%c0_24, %c0_25] : memref<64x48xbf16, #tpu.memory_space<vmem>>, vector<64x48xbf16>
      %cst_26 = arith.constant dense<0.000000e+00> : vector<8x48xf32>
      %40 = tpu.matmul %38, %39, %cst_26 {dimension_numbers = #tpu.dot_dimension_numbers<[1], [0], [0], [1], [0, 0, 1, 1], [], []>} : vector<8x64xbf16>, vector<64x48xbf16>, vector<8x48xf32> -> vector<8x48xf32>
      %c0_27 = arith.constant 0 : index
      %c0_28 = arith.constant 0 : index
      %41 = vector.load %arg8[%c0_27, %c0_28] : memref<1x48xf32, #tpu.memory_space<vmem>>, vector<1x48xf32>
      %42 = vector.broadcast %41 : vector<1x48xf32> to vector<8x48xf32>
      %43 = arith.addf %40, %42 : vector<8x48xf32>
      %44 = vector.extract_strided_slice %43 {offsets = [0, 0], sizes = [8, 16], strides = [1, 1]} : vector<8x48xf32> to vector<8x16xf32>
      %45 = vector.extract_strided_slice %43 {offsets = [0, 16], sizes = [8, 16], strides = [1, 1]} : vector<8x48xf32> to vector<8x16xf32>
      %cst_29 = arith.constant 2.000000e+01 : f32
      %46 = vector.broadcast %cst_29 : f32 to vector<8x16xf32>
      %47 = arith.minimumf %45, %46 : vector<8x16xf32>
      %48 = math.exp %47 : vector<8x16xf32>
      %cst_30 = arith.constant 2.000000e+01 : f32
      %49 = vector.broadcast %cst_30 : f32 to vector<8x16xf32>
      %50 = arith.cmpf ogt, %45, %49 : vector<8x16xf32>
      %51 = math.log1p %48 : vector<8x16xf32>
      %52 = arith.select %50, %45, %51 : vector<8x16xi1>, vector<8x16xf32>
      %53 = vector.extract_strided_slice %43 {offsets = [0, 32], sizes = [8, 16], strides = [1, 1]} : vector<8x48xf32> to vector<8x16xf32>
      %54 = math.tanh %53 : vector<8x16xf32>
      %cst_31 = arith.constant 1.000000e+00 : f32
      %55 = vector.broadcast %cst_31 : f32 to vector<8x16xf32>
      %56 = arith.mulf %55, %54 : vector<8x16xf32>
      %c0_32 = arith.constant 0 : index
      %c0_33 = arith.constant 0 : index
      %57 = vector.load %arg11[%c0_32, %c0_33] : memref<8x128xf32, #tpu.memory_space<vmem>>, vector<8x128xf32>
      %58 = vector.extract_strided_slice %57 {offsets = [0, 0], sizes = [8, 16], strides = [1, 1]} : vector<8x128xf32> to vector<8x16xf32>
      %59 = vector.extract_strided_slice %57 {offsets = [0, 16], sizes = [8, 16], strides = [1, 1]} : vector<8x128xf32> to vector<8x16xf32>
      %60 = vector.extract_strided_slice %57 {offsets = [0, 32], sizes = [8, 16], strides = [1, 1]} : vector<8x128xf32> to vector<8x16xf32>
      %cst_34 = arith.constant 0.000000e+00 : f32
      %61 = vector.broadcast %cst_34 : f32 to vector<8x16xf32>
      %62 = vector.extract_strided_slice %57 {offsets = [0, 48], sizes = [8, 16], strides = [1, 1]} : vector<8x128xf32> to vector<8x16xf32>
      %63 = arith.mulf %56, %62 : vector<8x16xf32>
      %64 = arith.addf %61, %63 : vector<8x16xf32>
      %65 = arith.mulf %58, %52 : vector<8x16xf32>
      %66 = arith.addf %44, %65 : vector<8x16xf32>
      %67 = arith.addf %66, %64 : vector<8x16xf32>
      %cst_35 = arith.constant 1.000000e+00 : f32
      %68 = vector.broadcast %cst_35 : f32 to vector<8x16xf32>
      %69 = arith.mulf %68, %67 : vector<8x16xf32>
      %70 = arith.cmpf ogt, %69, %59 : vector<8x16xf32>
      %71 = arith.extui %70 : vector<8x16xi1> to vector<8x16xi32>
      %72 = arith.sitofp %71 : vector<8x16xi32> to vector<8x16xf32>
      %cst_36 = arith.constant 1.000000e+00 : f32
      %73 = vector.broadcast %cst_36 : f32 to vector<8x16xf32>
      %74 = arith.mulf %60, %73 : vector<8x16xf32>
      %75 = arith.addf %72, %74 : vector<8x16xf32>
      %76 = arith.truncf %75 : vector<8x16xf32> to vector<8x16xbf16>
      %c0_37 = arith.constant 0 : index
      %c0_38 = arith.constant 0 : index
      %77 = vector.load %arg14[%c0_37, %c0_38] : memref<8x16xbf16, #tpu.memory_space<vmem>>, vector<8x16xbf16>
      tpu.vector_store %arg14[%c0_37, %c0_38], %76 {strides = array<i32>} : memref<8x16xbf16, #tpu.memory_space<vmem>>, vector<8x16xbf16>,
      %cst_39 = arith.constant 0.000000e+00 : f32
      %78 = vector.broadcast %cst_39 : f32 to vector<8x64xf32>
      %79 = tpu.concatenate %72, %44, %52, %56, %78 in 1 : vector<8x16xf32>, vector<8x16xf32>, vector<8x16xf32>, vector<8x16xf32>, vector<8x64xf32> -> vector<8x128xf32>
      %c0_40 = arith.constant 0 : index
      %c0_41 = arith.constant 0 : index
      %80 = vector.load %arg12[%c0_40, %c0_41] : memref<8x128xf32, #tpu.memory_space<vmem>>, vector<8x128xf32>
      tpu.vector_store %arg12[%c0_40, %c0_41], %79 {strides = array<i32>} : memref<8x128xf32, #tpu.memory_space<vmem>>, vector<8x128xf32>,
    } else {
    }
    %c0 = arith.constant 0 : index
    %c0_1 = arith.constant 0 : index
    %3 = vector.load %arg14[%c0, %c0_1] : memref<8x16xbf16, #tpu.memory_space<vmem>>, vector<8x16xbf16>
    %c0_2 = arith.constant 0 : index
    %c0_3 = arith.constant 0 : index
    %4 = vector.load %arg9[%c0_2, %c0_3] : memref<16x128xbf16, #tpu.memory_space<vmem>>, vector<16x128xbf16>
    %cst = arith.constant dense<0.000000e+00> : vector<8x128xf32>
    %5 = tpu.matmul %3, %4, %cst {dimension_numbers = #tpu.dot_dimension_numbers<[1], [0], [0], [1], [0, 0, 1, 1], [], []>} : vector<8x16xbf16>, vector<16x128xbf16>, vector<8x128xf32> -> vector<8x128xf32>
    %c0_4 = arith.constant 0 : index
    %c0_5 = arith.constant 0 : index
    %6 = vector.load %arg10[%c0_4, %c0_5] : memref<1x128xf32, #tpu.memory_space<vmem>>, vector<1x128xf32>
    %7 = vector.broadcast %6 : vector<1x128xf32> to vector<8x128xf32>
    %8 = arith.addf %5, %7 : vector<8x128xf32>
    %cst_6 = arith.constant dense<0xFF800000> : vector<8xf32>
    %9 = vector.multi_reduction <maximumf>, %8, %cst_6 [1] : vector<8x128xf32> to vector<8xf32>
    %10 = vector.shape_cast %9 : vector<8xf32> to vector<8x1xf32>
    %11 = vector.broadcast %10 : vector<8x1xf32> to vector<8x128xf32>
    %12 = arith.subf %8, %11 : vector<8x128xf32>
    %13 = math.exp %12 : vector<8x128xf32>
    %cst_7 = arith.constant dense<0.000000e+00> : vector<8xf32>
    %14 = vector.multi_reduction <add>, %13, %cst_7 [1] : vector<8x128xf32> to vector<8xf32>
    %15 = vector.shape_cast %14 : vector<8xf32> to vector<8x1xf32>
    %16 = math.log %15 : vector<8x1xf32>
    %17 = arith.addf %10, %16 : vector<8x1xf32>
    %18 = vector.broadcast %17 : vector<8x1xf32> to vector<8x128xf32>
    %19 = arith.subf %8, %18 : vector<8x128xf32>
    %20 = arith.truncf %19 : vector<8x128xf32> to vector<8x128xbf16>
    %c0_8 = arith.constant 0 : index
    %c0_9 = arith.constant 0 : index
    %21 = vector.load %arg13[%c0_8, %c0_9] : memref<8x128xbf16, #tpu.memory_space<vmem>>, vector<8x128xbf16>
    tpu.vector_store %arg13[%c0_8, %c0_9], %20 {strides = array<i32>} : memref<8x128xbf16, #tpu.memory_space<vmem>>, vector<8x128xbf16>,
    return
  }
  func.func @transform_0(%arg0: i32, %arg1: i32) -> (i32, i32) {
    %c0_i32 = arith.constant 0 : i32
    %c0_i32_0 = arith.constant 0 : i32
    return %arg0, %c0_i32 : i32, i32
  }
  func.func @transform_1(%arg0: i32, %arg1: i32) -> (i32, i32) {
    %c0_i32 = arith.constant 0 : i32
    %c0_i32_0 = arith.constant 0 : i32
    %c0_i32_1 = arith.constant 0 : i32
    return %c0_i32, %c0_i32_0 : i32, i32
  }
  func.func @transform_2(%arg0: i32, %arg1: i32) -> (i32, i32) {
    %c0_i32 = arith.constant 0 : i32
    %c0_i32_0 = arith.constant 0 : i32
    %c0_i32_1 = arith.constant 0 : i32
    return %c0_i32, %c0_i32_0 : i32, i32
  }
  func.func @transform_3(%arg0: i32, %arg1: i32) -> (i32, i32) {
    %c0_i32 = arith.constant 0 : i32
    %c0_i32_0 = arith.constant 0 : i32
    %c0_i32_1 = arith.constant 0 : i32
    return %c0_i32, %c0_i32_0 : i32, i32
  }
  func.func @transform_4(%arg0: i32, %arg1: i32) -> (i32, i32) {
    %c0_i32 = arith.constant 0 : i32
    %c0_i32_0 = arith.constant 0 : i32
    %c0_i32_1 = arith.constant 0 : i32
    return %c0_i32, %c0_i32_0 : i32, i32
  }
  func.func @transform_5(%arg0: i32, %arg1: i32) -> (i32, i32) {
    %c0_i32 = arith.constant 0 : i32
    %c0_i32_0 = arith.constant 0 : i32
    %c0_i32_1 = arith.constant 0 : i32
    return %c0_i32, %c0_i32_0 : i32, i32
  }
  func.func @transform_6(%arg0: i32, %arg1: i32) -> (i32, i32) {
    %c0_i32 = arith.constant 0 : i32
    %c0_i32_0 = arith.constant 0 : i32
    %c0_i32_1 = arith.constant 0 : i32
    return %c0_i32, %c0_i32_0 : i32, i32
  }
  func.func @transform_7(%arg0: i32, %arg1: i32) -> (i32, i32) {
    %c1_i32 = arith.constant 1 : i32
    %c0_i32 = arith.constant 0 : i32
    %0 = arith.cmpi eq, %c1_i32, %c0_i32 : i32
    %c1_i32_0 = arith.constant 1 : i32
    %1 = arith.select %0, %c1_i32_0, %c1_i32 : i32
    %2 = arith.remsi %arg1, %1 : i32
    %c0_i32_1 = arith.constant 0 : i32
    %3 = arith.cmpi ne, %2, %c0_i32_1 : i32
    %c0_i32_2 = arith.constant 0 : i32
    %4 = arith.cmpi slt, %2, %c0_i32_2 : i32
    %c0_i32_3 = arith.constant 0 : i32
    %5 = arith.cmpi slt, %1, %c0_i32_3 : i32
    %6 = arith.xori %4, %5 : i1
    %7 = arith.andi %6, %3 : i1
    %8 = arith.addi %2, %1 : i32
    %9 = arith.select %7, %8, %2 : i32
    %c0_i32_4 = arith.constant 0 : i32
    %c0_i32_5 = arith.constant 0 : i32
    return %c0_i32_4, %9 : i32, i32
  }
  func.func @transform_8(%arg0: i32, %arg1: i32) -> (i32, i32) {
    %c1_i32 = arith.constant 1 : i32
    %c0_i32 = arith.constant 0 : i32
    %0 = arith.cmpi eq, %c1_i32, %c0_i32 : i32
    %c1_i32_0 = arith.constant 1 : i32
    %1 = arith.select %0, %c1_i32_0, %c1_i32 : i32
    %2 = arith.remsi %arg1, %1 : i32
    %c0_i32_1 = arith.constant 0 : i32
    %3 = arith.cmpi ne, %2, %c0_i32_1 : i32
    %c0_i32_2 = arith.constant 0 : i32
    %4 = arith.cmpi slt, %2, %c0_i32_2 : i32
    %c0_i32_3 = arith.constant 0 : i32
    %5 = arith.cmpi slt, %1, %c0_i32_3 : i32
    %6 = arith.xori %4, %5 : i1
    %7 = arith.andi %6, %3 : i1
    %8 = arith.addi %2, %1 : i32
    %9 = arith.select %7, %8, %2 : i32
    %c0_i32_4 = arith.constant 0 : i32
    %c0_i32_5 = arith.constant 0 : i32
    return %c0_i32_4, %9 : i32, i32
  }
  func.func @transform_9(%arg0: i32, %arg1: i32) -> (i32, i32) {
    %c0_i32 = arith.constant 0 : i32
    %c0_i32_0 = arith.constant 0 : i32
    return %arg0, %c0_i32 : i32, i32
  }
  func.func @transform_10(%arg0: i32, %arg1: i32) -> (i32, i32) {
    %c0_i32 = arith.constant 0 : i32
    %c0_i32_0 = arith.constant 0 : i32
    return %arg0, %c0_i32 : i32, i32
  }
  func.func @transform_11(%arg0: i32, %arg1: i32) -> (i32, i32) {
    %c1_i32 = arith.constant 1 : i32
    %0 = arith.subi %arg1, %c1_i32 : i32
    %c0_i32 = arith.constant 0 : i32
    %1 = arith.maxsi %0, %c0_i32 : i32
    %c0_i32_0 = arith.constant 0 : i32
    return %arg0, %1 : i32, i32
  }
}

</mosaic_0001>

<llo_original>
// kernel: tpu_custom_call.1
$region0: #{tpu_custom_call.1}
  #allocation0 [shape = 'u32[]', space=smem, size = 0x4, offset = 0x4, fixed_abs, tag = 'smem constant byte address 0x4 - core index']
  #allocation1 [shape = 'u32[144,128]{1,0:T(1,128)}', space=vmem, size = 0x12000, scoped, tag = 'internal scratch']
  #allocation2 [shape = 'bf16[8,16]{1,0:T(8,128)(2,1)}', space=vmem, size = 0x800, scoped, tag = 'scratch operand']
  #allocation3 [shape = 'f32[8,1]{1,0:T(8,128)}', space=vmem, size = 0x1000, scoped, tag = 'scratch operand']
  #allocation4 [shape = 'f32[8,1]{1,0:T(8,128)}', space=vmem, size = 0x1000, scoped, tag = 'scratch operand']
  %s0 = inlined_call_operand.vmem [shape: bf16[8,128], index: 0, kind: input, shape index: {}]
  %s1 = inlined_call_operand.vmem [shape: bf16[128,64], index: 1, kind: input, shape index: {}]
  %s2 = inlined_call_operand.vmem [shape: f32[1,64], index: 2, kind: input, shape index: {}]
  %s3 = inlined_call_operand.vmem [shape: bf16[64,64], index: 3, kind: input, shape index: {}]
  %s4 = inlined_call_operand.vmem [shape: f32[1,64], index: 4, kind: input, shape index: {}]
  %s5 = inlined_call_operand.vmem [shape: bf16[64,48], index: 5, kind: input, shape index: {}]
  %s6 = inlined_call_operand.vmem [shape: f32[1,48], index: 6, kind: input, shape index: {}]
  %s7 = inlined_call_operand.vmem [shape: bf16[16,128], index: 7, kind: input, shape index: {}]
  %s8 = inlined_call_operand.vmem [shape: f32[1,128], index: 8, kind: input, shape index: {}]
  %s9 = inlined_call_operand.vmem [shape: f32[8,128], index: 9, kind: input, shape index: {}]
  %s10 = inlined_call_operand.hbm [shape: f32[8,128], index: 10, kind: output, shape index: {0}]
  %s11 = inlined_call_operand.hbm [shape: bf16[8,128], index: 11, kind: output, shape index: {1}]
  %12 = xla_tuple %s10, %s11
  %s13 = sld [smem:[#allocation0]]
  $region62: #{tpu_custom_call.1} parent=0
    _
  %s15 = ssub.s32 1, %s13
  %s16 = scalar_select 0, %s15, %s13
  $region1: #{tpu_custom_call.1} parent=0
    #allocation5 [shape = 'u8[4096]{0}', space=vmem, size = 0x1000, scoped, tag = 'output window, operand 0, single buffered']
    #allocation6 [shape = 's32[1]{0}', space=sflag, size = 0x4, scoped, tag = 'scoped memory for tpu_custom_call.1']
    #allocation7 [shape = 'u8[2048]{0}', space=vmem, size = 0x800, scoped, tag = 'output window, operand 1, single buffered']
    #allocation8 [shape = 's32[1]{0}', space=sflag, size = 0x4, scoped, tag = 'scoped memory for tpu_custom_call.1']
    %17 = vsyncpa [#allocation6], 0
    %18 = vsyncpa [#allocation8], 0
    // Predicated region
    $region2: #{tpu_custom_call.1} parent=1 // pred_check
      _
    $region3: #{tpu_custom_call.1} parent=1 // pred_check_branch
      %20 = sbr.rel (0) target = $region5
    $region4: #{tpu_custom_call.1} parent=1 // pred_region
      _
    $region5: #{tpu_custom_call.1} parent=1 // pred_fallthru
      _
    // Predicated region
    $region6: #{tpu_custom_call.1} parent=1 // pred_check
      _
    $region7: #{tpu_custom_call.1} parent=1 // pred_check_branch
      %22 = sbr.rel (0) target = $region9
    $region8: #{tpu_custom_call.1} parent=1 // pred_region
      _
    $region9: #{tpu_custom_call.1} parent=1 // pred_fallthru
      _
    // Predicated region
    $region10: #{tpu_custom_call.1} parent=1 // pred_check
      _
    $region11: #{tpu_custom_call.1} parent=1 // pred_check_branch
      %24 = sbr.rel (0) target = $region13
    $region12: #{tpu_custom_call.1} parent=1 // pred_region
      _
    $region13: #{tpu_custom_call.1} parent=1 // pred_fallthru
      _
    // Predicated region
    $region14: #{tpu_custom_call.1} parent=1 // pred_check
      _
    $region15: #{tpu_custom_call.1} parent=1 // pred_check_branch
      %26 = sbr.rel (0) target = $region17
    $region16: #{tpu_custom_call.1} parent=1 // pred_region
      _
    $region17: #{tpu_custom_call.1} parent=1 // pred_fallthru
      _
    // Predicated region
    $region18: #{tpu_custom_call.1} parent=1 // pred_check
      _
    $region19: #{tpu_custom_call.1} parent=1 // pred_check_branch
      %28 = sbr.rel (0) target = $region21
    $region20: #{tpu_custom_call.1} parent=1 // pred_region
      _
    $region21: #{tpu_custom_call.1} parent=1 // pred_fallthru
      _
    // Predicated region
    $region22: #{tpu_custom_call.1} parent=1 // pred_check
      _
    $region23: #{tpu_custom_call.1} parent=1 // pred_check_branch
      %30 = sbr.rel (0) target = $region25
    $region24: #{tpu_custom_call.1} parent=1 // pred_region
      _
    $region25: #{tpu_custom_call.1} parent=1 // pred_fallthru
      _
    // Predicated region
    $region26: #{tpu_custom_call.1} parent=1 // pred_check
      _
    $region27: #{tpu_custom_call.1} parent=1 // pred_check_branch
      %32 = sbr.rel (0) target = $region29
    $region28: #{tpu_custom_call.1} parent=1 // pred_region
      _
    $region29: #{tpu_custom_call.1} parent=1 // pred_fallthru
      _
    // Predicated region
    $region30: #{tpu_custom_call.1} parent=1 // pred_check
      _
    $region31: #{tpu_custom_call.1} parent=1 // pred_check_branch
      %34 = sbr.rel (0) target = $region33
    $region32: #{tpu_custom_call.1} parent=1 // pred_region
      _
    $region33: #{tpu_custom_call.1} parent=1 // pred_fallthru
      _
    // Predicated region
    $region34: #{tpu_custom_call.1} parent=1 // pred_check
      _
    $region35: #{tpu_custom_call.1} parent=1 // pred_check_branch
      %36 = sbr.rel (0) target = $region37
    $region36: #{tpu_custom_call.1} parent=1 // pred_region
      _
    $region37: #{tpu_custom_call.1} parent=1 // pred_fallthru
      _
    // Predicated region
    $region38: #{tpu_custom_call.1} parent=1 // pred_check
      _
    $region39: #{tpu_custom_call.1} parent=1 // pred_check_branch
      %38 = sbr.rel (0) target = $region41
    $region40: #{tpu_custom_call.1} parent=1 // pred_region
      _
    $region41: #{tpu_custom_call.1} parent=1 // pred_fallthru
      _
    %s39 = ssub.s32 0, 1
    %p40 = scmp.gt.s32.totalorder %s39, 0
    %s41 = scalar_select %p40, %s39, 0
    %p43 = scmp.eq.s32.totalorder 0, 0
    // Predicated region
    $region42: #{tpu_custom_call.1} parent=1 // pred_check
      %p44 = pneg %p43
    $region43: #{tpu_custom_call.1} parent=1 // pred_check_branch
      %46 = sbr.rel (%p44) target = $region45
    $region44: #{tpu_custom_call.1} parent=1 // pred_region
      %v47 = vld [vmem:[%s0] sm:$0xf]
      %v48 = vld [vmem:[%s1] sm:$0xf]
      %v49 = vld [vmem:[%s1 + $0x4] sm:$0xf]
      %v50 = vld [vmem:[%s1 + $0x8] sm:$0xf]
      %v51 = vld [vmem:[%s1 + $0xc] sm:$0xf]
      %v52 = vld [vmem:[%s1 + $0x10] sm:$0xf]
      %v53 = vld [vmem:[%s1 + $0x14] sm:$0xf]
      %v54 = vld [vmem:[%s1 + $0x18] sm:$0xf]
      %v55 = vld [vmem:[%s1 + $0x1c] sm:$0xf]
      %v56 = vld [vmem:[%s1 + $0x20] sm:$0xf]
      %v57 = vld [vmem:[%s1 + $0x24] sm:$0xf]
      %v58 = vld [vmem:[%s1 + $0x28] sm:$0xf]
      %v59 = vld [vmem:[%s1 + $0x2c] sm:$0xf]
      %v60 = vld [vmem:[%s1 + $0x30] sm:$0xf]
      %v61 = vld [vmem:[%s1 + $0x34] sm:$0xf]
      %v62 = vld [vmem:[%s1 + $0x38] sm:$0xf]
      %v63 = vld [vmem:[%s1 + $0x3c] sm:$0xf]
      %v64 = vld [vmem:[%s2] sm:$0x1]
      %v66 = vlaneseq
      %v67 = vshrl.u32 %v66, 7
      %v68 = vsub.s32 0, %v67
      %v69 = vrot.slane %v64, %v68
      %v87 = vunpack.c.l.b16 %v48
      %v88 = vunpack.c.l.b16 %v49
      %v89 = vunpack.c.l.b16 %v50
      %v90 = vunpack.c.l.b16 %v51
      %v91 = vunpack.c.l.b16 %v52
      %v92 = vunpack.c.l.b16 %v53
      %v93 = vunpack.c.l.b16 %v54
      %v94 = vunpack.c.l.b16 %v55
      %v95 = vunpack.c.l.b16 %v56
      %v96 = vunpack.c.l.b16 %v57
      %v97 = vunpack.c.l.b16 %v58
      %v98 = vunpack.c.l.b16 %v59
      %v99 = vunpack.c.l.b16 %v60
      %v100 = vunpack.c.l.b16 %v61
      %v101 = vunpack.c.l.b16 %v62
      %v102 = vunpack.c.l.b16 %v63
      %v103 = vpack.c.b16 %v88, %v87
      %v104 = vpack.c.b16 %v90, %v89
      %v105 = vpack.c.b16 %v92, %v91
      %v106 = vpack.c.b16 %v94, %v93
      %v107 = vpack.c.b16 %v96, %v95
      %v108 = vpack.c.b16 %v98, %v97
      %v109 = vpack.c.b16 %v100, %v99
      %v110 = vpack.c.b16 %v102, %v101
      %119 = vmatprep.subr.bf16.mxu0 0
      %120 = vmatpush1.bf16.msra.mxu0 %v103
      %121 = vmatprep.subr.bf16.mxu0 0
      %122 = vmatpush1.bf16.msra.mxu0 %v104
      %123 = vmatprep.subr.bf16.mxu0 0
      %124 = vmatpush1.bf16.msra.mxu0 %v105
      %125 = vmatprep.subr.bf16.mxu0 0
      %126 = vmatpush1.bf16.msra.mxu0 %v106
      %127 = vmatprep.subr.bf16.mxu0 0
      %128 = vmatpush1.bf16.msra.mxu0 %v107
      %129 = vmatprep.subr.bf16.mxu0 0
      %130 = vmatpush1.bf16.msra.mxu0 %v108
      %131 = vmatprep.subr.bf16.mxu0 0
      %132 = vmatpush1.bf16.msra.mxu0 %v109
      %133 = vmatprep.subr.bf16.mxu0 0
      %134 = vmatpush1.bf16.msra.mxu0 %v110
      %135 = vmatprep.subr.bf16.mxu0 0
      %136 = vmatpush1.bf16.msra.mxu0 0
      %137 = vmatprep.subr.bf16.mxu0 0
      %138 = vmatpush1.bf16.msra.mxu0 0
      %139 = vmatprep.subr.bf16.mxu0 0
      %140 = vmatpush1.bf16.msra.mxu0 0
      %141 = vmatprep.subr.bf16.mxu0 0
      %142 = vmatpush1.bf16.msra.mxu0 0
      %143 = vmatprep.subr.bf16.mxu0 0
      %144 = vmatpush1.bf16.msra.mxu0 0
      %145 = vmatprep.subr.bf16.mxu0 0
      %146 = vmatpush1.bf16.msra.mxu0 0
      %147 = vmatprep.subr.bf16.mxu0 0
      %148 = vmatpush1.bf16.msra.mxu0 0
      %149 = vmatprep.subr.bf16.mxu0 0
      %150 = vmatpush1.bf16.msra.mxu0 0
      %151 = vmatprep.mubr.bf16.mxu0 0
      %152 = vmatmul.mubr.bf16.gmra.mrb[0].mxu0 %v47
      %v153 = vpop.f32.mrb[0].mxu0
      %v154 = vadd.f32 %v69, %v153
      %v155 = vpop.f32.mrb[0].mxu0
      %v156 = vpop.f32.mrb[0].mxu0
      %v157 = vpop.f32.mrb[0].mxu0
      %158 = vdwg.mxu0
      %v159 = vmax.f32 %v154, 0.0
      %v160 = vpack.c.bf16 %v159, %v159
      %v161 = vld [vmem:[%s3] sm:$0xf]
      %v162 = vld [vmem:[%s3 + $0x4] sm:$0xf]
      %v163 = vld [vmem:[%s3 + $0x8] sm:$0xf]
      %v164 = vld [vmem:[%s3 + $0xc] sm:$0xf]
      %v165 = vld [vmem:[%s3 + $0x10] sm:$0xf]
      %v166 = vld [vmem:[%s3 + $0x14] sm:$0xf]
      %v167 = vld [vmem:[%s3 + $0x18] sm:$0xf]
      %v168 = vld [vmem:[%s3 + $0x1c] sm:$0xf]
      %v169 = vld [vmem:[%s4] sm:$0x1]
      %v171 = vlaneseq
      %v172 = vshrl.u32 %v171, 7
      %v173 = vsub.s32 0, %v172
      %v174 = vrot.slane %v169, %v173
      %v184 = vunpack.c.l.b16 %v161
      %v185 = vunpack.c.l.b16 %v162
      %v186 = vunpack.c.l.b16 %v163
      %v187 = vunpack.c.l.b16 %v164
      %v188 = vunpack.c.l.b16 %v165
      %v189 = vunpack.c.l.b16 %v166
      %v190 = vunpack.c.l.b16 %v167
      %v191 = vunpack.c.l.b16 %v168
      %v192 = vpack.c.b16 %v185, %v184
      %v193 = vpack.c.b16 %v187, %v186
      %v194 = vpack.c.b16 %v189, %v188
      %v195 = vpack.c.b16 %v191, %v190
      %vm200 = vcmask 523264
      %v202 = vsel %vm200, %v160, 0
      %204 = vmatprep.subr.bf16.mxu0 0
      %205 = vmatpush1.bf16.msra.mxu0 %v192
      %206 = vmatprep.subr.bf16.mxu0 0
      %207 = vmatpush1.bf16.msra.mxu0 %v193
      %208 = vmatprep.subr.bf16.mxu0 0
      %209 = vmatpush1.bf16.msra.mxu0 %v194
      %210 = vmatprep.subr.bf16.mxu0 0
      %211 = vmatpush1.bf16.msra.mxu0 %v195
      %212 = vmatprep.subr.bf16.mxu0 0
      %213 = vmatpush1.bf16.msra.mxu0 0
      %214 = vmatprep.subr.bf16.mxu0 0
      %215 = vmatpush1.bf16.msra.mxu0 0
      %216 = vmatprep.subr.bf16.mxu0 0
      %217 = vmatpush1.bf16.msra.mxu0 0
      %218 = vmatprep.subr.bf16.mxu0 0
      %219 = vmatpush1.bf16.msra.mxu0 0
      %220 = vmatprep.subr.bf16.mxu0 0
      %221 = vmatpush1.bf16.msra.mxu0 0
      %222 = vmatprep.subr.bf16.mxu0 0
      %223 = vmatpush1.bf16.msra.mxu0 0
      %224 = vmatprep.subr.bf16.mxu0 0
      %225 = vmatpush1.bf16.msra.mxu0 0
      %226 = vmatprep.subr.bf16.mxu0 0
      %227 = vmatpush1.bf16.msra.mxu0 0
      %228 = vmatprep.subr.bf16.mxu0 0
      %229 = vmatpush1.bf16.msra.mxu0 0
      %230 = vmatprep.subr.bf16.mxu0 0
      %231 = vmatpush1.bf16.msra.mxu0 0
      %232 = vmatprep.subr.bf16.mxu0 0
      %233 = vmatpush1.bf16.msra.mxu0 0
      %234 = vmatprep.subr.bf16.mxu0 0
      %235 = vmatpush1.bf16.msra.mxu0 0
      %236 = vmatprep.mubr.bf16.mxu0 0
      %237 = vmatmul.mubr.bf16.gmra.mrb[0].mxu0 %v202
      %v238 = vpop.f32.mrb[0].mxu0
      %v239 = vadd.f32 %v174, %v238
      %v240 = vpop.f32.mrb[0].mxu0
      %v241 = vpop.f32.mrb[0].mxu0
      %v242 = vpop.f32.mrb[0].mxu0
      %243 = vdwg.mxu0
      %v244 = vmax.f32 %v239, 0.0
      %v245 = vpack.c.bf16 %v244, %v244
      %v246 = vld [vmem:[%s5] sm:$0xf]
      %v247 = vld [vmem:[%s5 + $0x4] sm:$0xf]
      %v248 = vld [vmem:[%s5 + $0x8] sm:$0xf]
      %v249 = vld [vmem:[%s5 + $0xc] sm:$0xf]
      %v250 = vld [vmem:[%s5 + $0x10] sm:$0xf]
      %v251 = vld [vmem:[%s5 + $0x14] sm:$0xf]
      %v252 = vld [vmem:[%s5 + $0x18] sm:$0xf]
      %v253 = vld [vmem:[%s5 + $0x1c] sm:$0xf]
      %v254 = vld [vmem:[%s6] sm:$0x1]
      %v256 = vlaneseq
      %v257 = vshrl.u32 %v256, 7
      %v258 = vsub.s32 0, %v257
      %v259 = vrot.slane %v254, %v258
      %v269 = vunpack.c.l.b16 %v246
      %v270 = vunpack.c.l.b16 %v247
      %v271 = vunpack.c.l.b16 %v248
      %v272 = vunpack.c.l.b16 %v249
      %v273 = vunpack.c.l.b16 %v250
      %v274 = vunpack.c.l.b16 %v251
      %v275 = vunpack.c.l.b16 %v252
      %v276 = vunpack.c.l.b16 %v253
      %v277 = vpack.c.b16 %v270, %v269
      %v278 = vpack.c.b16 %v272, %v271
      %v279 = vpack.c.b16 %v274, %v273
      %v280 = vpack.c.b16 %v276, %v275
      %v286 = vsel %vm200, %v245, 0
      %288 = vmatprep.subr.bf16.mxu0 0
      %289 = vmatpush1.bf16.msra.mxu0 %v277
      %290 = vmatprep.subr.bf16.mxu0 0
      %291 = vmatpush1.bf16.msra.mxu0 %v278
      %292 = vmatprep.subr.bf16.mxu0 0
      %293 = vmatpush1.bf16.msra.mxu0 %v279
      %294 = vmatprep.subr.bf16.mxu0 0
      %295 = vmatpush1.bf16.msra.mxu0 %v280
      %296 = vmatprep.subr.bf16.mxu0 0
      %297 = vmatpush1.bf16.msra.mxu0 0
      %298 = vmatprep.subr.bf16.mxu0 0
      %299 = vmatpush1.bf16.msra.mxu0 0
      %300 = vmatprep.subr.bf16.mxu0 0
      %301 = vmatpush1.bf16.msra.mxu0 0
      %302 = vmatprep.subr.bf16.mxu0 0
      %303 = vmatpush1.bf16.msra.mxu0 0
      %304 = vmatprep.subr.bf16.mxu0 0
      %305 = vmatpush1.bf16.msra.mxu0 0
      %306 = vmatprep.subr.bf16.mxu0 0
      %307 = vmatpush1.bf16.msra.mxu0 0
      %308 = vmatprep.subr.bf16.mxu0 0
      %309 = vmatpush1.bf16.msra.mxu0 0
      %310 = vmatprep.subr.bf16.mxu0 0
      %311 = vmatpush1.bf16.msra.mxu0 0
      %312 = vmatprep.subr.bf16.mxu0 0
      %313 = vmatpush1.bf16.msra.mxu0 0
      %314 = vmatprep.subr.bf16.mxu0 0
      %315 = vmatpush1.bf16.msra.mxu0 0
      %316 = vmatprep.subr.bf16.mxu0 0
      %317 = vmatpush1.bf16.msra.mxu0 0
      %318 = vmatprep.subr.bf16.mxu0 0
      %319 = vmatpush1.bf16.msra.mxu0 0
      %320 = vmatprep.mubr.bf16.mxu0 0
      %321 = vmatmul.mubr.bf16.gmra.mrb[0].mxu0 %v286
      %v322 = vpop.f32.mrb[0].mxu0
      %v323 = vadd.f32 %v259, %v322
      %v324 = vpop.f32.mrb[0].mxu0
      %v325 = vpop.f32.mrb[0].mxu0
      %v326 = vpop.f32.mrb[0].mxu0
      %327 = vdwg.mxu0
      %v328 = vmin.f32 %v323, 20.0
      %v329 = vmul.f32 %v328, 1.442695
      %v330 = vpow.pop %v329
      %vm331 = vcmp.gt.f32.partialorder %v323, 20.0
      %v332 = vadd.f32 %v330, 1.0
      %v333 = vlog2.pop %v332
      %v334 = vmul.f32 %v333, 0.6931472
      %v335 = vmul.f32 -0.5, %v330
      %v336 = vadd.f32 %v335, 1.0
      %v337 = vmul.f32 %v336, %v330
      %v338 = vand.u32 2147483647, %v330
      %vm339 = vcmp.lt.f32.partialorder %v338, 0.0004427343
      %v340 = vsel %vm339, %v337, %v334
      %v341 = vsel %vm331, %v323, %v340
      %v342 = vtanh.pop %v323
      %v343 = vld [vmem:[%s9] sm:$0xff]
      %345 = vrot.lane.b32.xlu0 %v343, 112
      %v346 = vpop.permute.xlu0 %345
      %v348 = vmul.f32 %v342, %v346
      %v349 = vadd.f32 %v348, 0.0
      %351 = vrot.lane.b32.xlu0 %v341, 112
      %v352 = vpop.permute.xlu0 %351
      %v354 = vmul.f32 %v343, %v352
      %v355 = vadd.f32 %v323, %v354
      %357 = vrot.lane.b32.xlu0 %v349, 96
      %v358 = vpop.permute.xlu0 %357
      %v360 = vadd.f32 %v355, %v358
      %vm361 = vcmp.gt.f32.partialorder %v360, %v346
      %v362 = vsel %vm361, 1, 0
      %v363 = vcvt.s32.f32 %v362
      %364 = vrot.lane.b32.xlu0 %v343, 96
      %v365 = vpop.permute.xlu0 %364
      %v367 = vadd.f32 %v363, %v365
      %v368 = vpack.c.bf16 %v367, %v367
      %vm369 = vcmask 125952
      %370 = vst.msk [vmem:[#allocation2] sm:$0xf] %vm369, %v368
      %372 = vrot.lane.b32.xlu0 %v323, 16
      %v373 = vpop.permute.xlu0 %372
      %375 = vrot.lane.b32.xlu0 %v341, 16
      %v376 = vpop.permute.xlu0 %375
      %379 = vrot.lane.b32.xlu0 %v342, 16
      %v380 = vpop.permute.xlu0 %379
      %vm382 = vcmask 130048
      %v383 = vsel %vm382, %v363, %v373
      %vm384 = vcmask 261120
      %v385 = vsel %vm384, %v383, %v376
      %vm386 = vcmask 392192
      %v387 = vsel %vm386, %v385, %v380
      %v388 = vsel %vm200, %v387, 0.0
      %389 = vst [vmem:[#allocation5] sm:$0xff] %v388
    $region45: #{tpu_custom_call.1} parent=1 // pred_fallthru
      _
    %v390 = vld [vmem:[#allocation2] sm:$0xf]
    %v391 = vld [vmem:[%s7] sm:$0xf]
    %v392 = vld [vmem:[%s7 + $0x4] sm:$0xf]
    %v393 = vld [vmem:[%s8] sm:$0x1]
    %v395 = vlaneseq
    %v396 = vshrl.u32 %v395, 7
    %v397 = vsub.s32 0, %v396
    %v398 = vrot.slane %v393, %v397
    %v402 = vunpack.c.l.b16 %v391
    %v403 = vunpack.c.l.b16 %v392
    %v404 = vpack.c.b16 %v403, %v402
    %vm406 = vcmask 130048
    %v408 = vsel %vm406, %v390, 0
    %410 = vmatprep.subr.bf16.mxu0 0
    %411 = vmatpush1.bf16.msra.mxu0 %v404
    %412 = vmatprep.subr.bf16.mxu0 0
    %413 = vmatpush1.bf16.msra.mxu0 0
    %414 = vmatprep.subr.bf16.mxu0 0
    %415 = vmatpush1.bf16.msra.mxu0 0
    %416 = vmatprep.subr.bf16.mxu0 0
    %417 = vmatpush1.bf16.msra.mxu0 0
    %418 = vmatprep.subr.bf16.mxu0 0
    %419 = vmatpush1.bf16.msra.mxu0 0
    %420 = vmatprep.subr.bf16.mxu0 0
    %421 = vmatpush1.bf16.msra.mxu0 0
    %422 = vmatprep.subr.bf16.mxu0 0
    %423 = vmatpush1.bf16.msra.mxu0 0
    %424 = vmatprep.subr.bf16.mxu0 0
    %425 = vmatpush1.bf16.msra.mxu0 0
    %426 = vmatprep.subr.bf16.mxu0 0
    %427 = vmatpush1.bf16.msra.mxu0 0
    %428 = vmatprep.subr.bf16.mxu0 0
    %429 = vmatpush1.bf16.msra.mxu0 0
    %430 = vmatprep.subr.bf16.mxu0 0
    %431 = vmatpush1.bf16.msra.mxu0 0
    %432 = vmatprep.subr.bf16.mxu0 0
    %433 = vmatpush1.bf16.msra.mxu0 0
    %434 = vmatprep.subr.bf16.mxu0 0
    %435 = vmatpush1.bf16.msra.mxu0 0
    %436 = vmatprep.subr.bf16.mxu0 0
    %437 = vmatpush1.bf16.msra.mxu0 0
    %438 = vmatprep.subr.bf16.mxu0 0
    %439 = vmatpush1.bf16.msra.mxu0 0
    %440 = vmatprep.subr.bf16.mxu0 0
    %441 = vmatpush1.bf16.msra.mxu0 0
    %442 = vmatprep.mubr.bf16.mxu0 0
    %443 = vmatmul.mubr.bf16.gmra.mrb[0].mxu0 %v408
    %v444 = vpop.f32.mrb[0].mxu0
    %v445 = vadd.f32 %v398, %v444
    %v446 = vpop.f32.mrb[0].mxu0
    %v447 = vpop.f32.mrb[0].mxu0
    %v448 = vpop.f32.mrb[0].mxu0
    %449 = vdwg.mxu0
    %450 = vmax.xlane.f32.xlu0 %v445
    %v451 = vpop.xlane.xlu0 %450
    %v452 = vsub.f32 %v445, %v451
    %v453 = vmul.f32 %v452, 1.442695
    %v454 = vpow.pop %v453
    %455 = vadd.xlane.f32.xlu0 %v454
    %v456 = vpop.xlane.xlu0 %455
    %v457 = vlog2.pop %v456
    %v458 = vmul.f32 %v457, 0.6931472
    %v459 = vadd.f32 %v451, %v458
    %v460 = vsub.f32 %v445, %v459
    %v461 = vpack.c.bf16 %v460, %v460
    %462 = vst [vmem:[#allocation7] sm:$0xf] %v461
    // Predicated region
    $region46: #{tpu_custom_call.1} parent=1 // pred_check
      _
    $region47: #{tpu_custom_call.1} parent=1 // pred_check_branch
      %464 = sbr.rel (0) target = $region49
    $region48: #{tpu_custom_call.1} parent=1 // pred_region
      %s466 = ssub.s32 128, 128
      %467 = vsyncadd [#allocation6], %s466
      %s469 = sshll.u32 [#allocation5], 4
      %s470 = int_to_ptr.vmem [resolvable:$true] %s469
      %472 = dma.vmem_to_hbm [thread:$0]  %s470, 128, %s10, [#allocation6]
    $region49: #{tpu_custom_call.1} parent=1 // pred_fallthru
      _
    // Predicated region
    $region50: #{tpu_custom_call.1} parent=1 // pred_check
      _
    $region51: #{tpu_custom_call.1} parent=1 // pred_check_branch
      %474 = sbr.rel (0) target = $region53
    $region52: #{tpu_custom_call.1} parent=1 // pred_region
      %s475 = ssub.s32 0, 1
      %p476 = scmp.gt.s32.totalorder %s475, 0
      %s477 = scalar_select %p476, %s475, 0
      %s479 = ssub.s32 64, 64
      %480 = vsyncadd [#allocation8], %s479
      %s481 = smul.addr %s477, 64
      %s482 = scalar_lea.hbm %s11, %s481
      %s484 = sshll.u32 [#allocation7], 4
      %s485 = int_to_ptr.vmem [resolvable:$true] %s484
      %487 = dma.vmem_to_hbm [thread:$0]  %s485, 64, %s482, [#allocation8]
    $region53: #{tpu_custom_call.1} parent=1 // pred_fallthru
      _
    // Predicated region
    $region54: #{tpu_custom_call.1} parent=1 // pred_check
      _
    $region55: #{tpu_custom_call.1} parent=1 // pred_check_branch
      %489 = sbr.rel (0) target = $region57
    $region56: #{tpu_custom_call.1} parent=1 // pred_region
      %490 = dma.done [#allocation6], 128
    $region57: #{tpu_custom_call.1} parent=1 // pred_fallthru
      _
    // Predicated region
    $region58: #{tpu_custom_call.1} parent=1 // pred_check
      _
    $region59: #{tpu_custom_call.1} parent=1 // pred_check_branch
      %492 = sbr.rel (0) target = $region61
    $region60: #{tpu_custom_call.1} parent=1 // pred_region
      %493 = dma.done [#allocation8], 64
    $region61: #{tpu_custom_call.1} parent=1 // pred_fallthru
      _
    %494 = vsyncpa [#allocation6], 1
    %495 = vsyncpa [#allocation8], 1

// kernel: tpu_custom_call.1
$region0: #{tpu_custom_call.1}
  #allocation0 [shape = 'u32[]', space=smem, size = 0x4, offset = 0x4, fixed_abs, tag = 'smem constant byte address 0x4 - core index']
  #allocation1 [shape = 'u32[144,128]{1,0:T(1,128)}', space=vmem, size = 0x12000, scoped, tag = 'internal scratch']
  #allocation2 [shape = 'bf16[8,16]{1,0:T(8,128)(2,1)}', space=vmem, size = 0x800, scoped, tag = 'scratch operand']
  #allocation3 [shape = 'f32[8,1]{1,0:T(8,128)}', space=vmem, size = 0x1000, scoped, tag = 'scratch operand']
  #allocation4 [shape = 'f32[8,1]{1,0:T(8,128)}', space=vmem, size = 0x1000, scoped, tag = 'scratch operand']
  %s0 = inlined_call_operand.vmem [shape: bf16[8,128], index: 0, kind: input, shape index: {}]
  %s1 = inlined_call_operand.vmem [shape: bf16[128,64], index: 1, kind: input, shape index: {}]
  %s2 = inlined_call_operand.vmem [shape: f32[1,64], index: 2, kind: input, shape index: {}]
  %s3 = inlined_call_operand.vmem [shape: bf16[64,64], index: 3, kind: input, shape index: {}]
  %s4 = inlined_call_operand.vmem [shape: f32[1,64], index: 4, kind: input, shape index: {}]
  %s5 = inlined_call_operand.vmem [shape: bf16[64,48], index: 5, kind: input, shape index: {}]
  %s6 = inlined_call_operand.vmem [shape: f32[1,48], index: 6, kind: input, shape index: {}]
  %s7 = inlined_call_operand.vmem [shape: bf16[16,128], index: 7, kind: input, shape index: {}]
  %s8 = inlined_call_operand.vmem [shape: f32[1,128], index: 8, kind: input, shape index: {}]
  %s9 = inlined_call_operand.vmem [shape: f32[8,128], index: 9, kind: input, shape index: {}]
  %s10 = inlined_call_operand.hbm [shape: f32[8,128], index: 10, kind: output, shape index: {0}]
  %s11 = inlined_call_operand.hbm [shape: bf16[8,128], index: 11, kind: output, shape index: {1}]
  %12 = xla_tuple %s10, %s11
  %s13 = sld [smem:[#allocation0]]
  $region62: #{tpu_custom_call.1} parent=0
    _
  %s15 = ssub.s32 1, %s13
  %s16 = scalar_select 0, %s15, %s13
  $region1: #{tpu_custom_call.1} parent=0
    #allocation5 [shape = 'u8[4096]{0}', space=vmem, size = 0x1000, scoped, tag = 'output window, operand 0, single buffered']
    #allocation6 [shape = 's32[1]{0}', space=sflag, size = 0x4, scoped, tag = 'scoped memory for tpu_custom_call.1']
    #allocation7 [shape = 'u8[2048]{0}', space=vmem, size = 0x800, scoped, tag = 'output window, operand 1, single buffered']
    #allocation8 [shape = 's32[1]{0}', space=sflag, size = 0x4, scoped, tag = 'scoped memory for tpu_custom_call.1']
    %17 = vsyncpa [#allocation6], 0
    %18 = vsyncpa [#allocation8], 0
    // Predicated region
    $region2: #{tpu_custom_call.1} parent=1 // pred_check
      _
    $region3: #{tpu_custom_call.1} parent=1 // pred_check_branch
      %20 = sbr.rel (0) target = $region5
    $region4: #{tpu_custom_call.1} parent=1 // pred_region
      _
    $region5: #{tpu_custom_call.1} parent=1 // pred_fallthru
      _
    // Predicated region
    $region6: #{tpu_custom_call.1} parent=1 // pred_check
      _
    $region7: #{tpu_custom_call.1} parent=1 // pred_check_branch
      %22 = sbr.rel (0) target = $region9
    $region8: #{tpu_custom_call.1} parent=1 // pred_region
      _
    $region9: #{tpu_custom_call.1} parent=1 // pred_fallthru
      _
    // Predicated region
    $region10: #{tpu_custom_call.1} parent=1 // pred_check
      _
    $region11: #{tpu_custom_call.1} parent=1 // pred_check_branch
      %24 = sbr.rel (0) target = $region13
    $region12: #{tpu_custom_call.1} parent=1 // pred_region
      _
    $region13: #{tpu_custom_call.1} parent=1 // pred_fallthru
      _
    // Predicated region
    $region14: #{tpu_custom_call.1} parent=1 // pred_check
      _
    $region15: #{tpu_custom_call.1} parent=1 // pred_check_branch
      %26 = sbr.rel (0) target = $region17
    $region16: #{tpu_custom_call.1} parent=1 // pred_region
      _
    $region17: #{tpu_custom_call.1} parent=1 // pred_fallthru
      _
    // Predicated region
    $region18: #{tpu_custom_call.1} parent=1 // pred_check
      _
    $region19: #{tpu_custom_call.1} parent=1 // pred_check_branch
      %28 = sbr.rel (0) target = $region21
    $region20: #{tpu_custom_call.1} parent=1 // pred_region
      _
    $region21: #{tpu_custom_call.1} parent=1 // pred_fallthru
      _
    // Predicated region
    $region22: #{tpu_custom_call.1} parent=1 // pred_check
      _
    $region23: #{tpu_custom_call.1} parent=1 // pred_check_branch
      %30 = sbr.rel (0) target = $region25
    $region24: #{tpu_custom_call.1} parent=1 // pred_region
      _
    $region25: #{tpu_custom_call.1} parent=1 // pred_fallthru
      _
    // Predicated region
    $region26: #{tpu_custom_call.1} parent=1 // pred_check
      _
    $region27: #{tpu_custom_call.1} parent=1 // pred_check_branch
      %32 = sbr.rel (0) target = $region29
    $region28: #{tpu_custom_call.1} parent=1 // pred_region
      _
    $region29: #{tpu_custom_call.1} parent=1 // pred_fallthru
      _
    // Predicated region
    $region30: #{tpu_custom_call.1} parent=1 // pred_check
      _
    $region31: #{tpu_custom_call.1} parent=1 // pred_check_branch
      %34 = sbr.rel (0) target = $region33
    $region32: #{tpu_custom_call.1} parent=1 // pred_region
      _
    $region33: #{tpu_custom_call.1} parent=1 // pred_fallthru
      _
    // Predicated region
    $region34: #{tpu_custom_call.1} parent=1 // pred_check
      _
    $region35: #{tpu_custom_call.1} parent=1 // pred_check_branch
      %36 = sbr.rel (0) target = $region37
    $region36: #{tpu_custom_call.1} parent=1 // pred_region
      _
    $region37: #{tpu_custom_call.1} parent=1 // pred_fallthru
      _
    // Predicated region
    $region38: #{tpu_custom_call.1} parent=1 // pred_check
      _
    $region39: #{tpu_custom_call.1} parent=1 // pred_check_branch
      %38 = sbr.rel (0) target = $region41
    $region40: #{tpu_custom_call.1} parent=1 // pred_region
      _
    $region41: #{tpu_custom_call.1} parent=1 // pred_fallthru
      _
    %s39 = ssub.s32 0, 1
    %p40 = scmp.gt.s32.totalorder %s39, 0
    %s41 = scalar_select %p40, %s39, 0
    %p43 = scmp.eq.s32.totalorder 0, 0
    // Predicated region
    $region42: #{tpu_custom_call.1} parent=1 // pred_check
      %p44 = pneg %p43
    $region43: #{tpu_custom_call.1} parent=1 // pred_check_branch
      %46 = sbr.rel (%p44) target = $region45
    $region44: #{tpu_custom_call.1} parent=1 // pred_region
      %v47 = vld [vmem:[%s0] sm:$0xf]
      %v48 = vld [vmem:[%s1] sm:$0xf]
      %v49 = vld [vmem:[%s1 + $0x4] sm:$0xf]
      %v50 = vld [vmem:[%s1 + $0x8] sm:$0xf]
      %v51 = vld [vmem:[%s1 + $0xc] sm:$0xf]
      %v52 = vld [vmem:[%s1 + $0x10] sm:$0xf]
      %v53 = vld [vmem:[%s1 + $0x14] sm:$0xf]
      %v54 = vld [vmem:[%s1 + $0x18] sm:$0xf]
      %v55 = vld [vmem:[%s1 + $0x1c] sm:$0xf]
      %v56 = vld [vmem:[%s1 + $0x20] sm:$0xf]
      %v57 = vld [vmem:[%s1 + $0x24] sm:$0xf]
      %v58 = vld [vmem:[%s1 + $0x28] sm:$0xf]
      %v59 = vld [vmem:[%s1 + $0x2c] sm:$0xf]
      %v60 = vld [vmem:[%s1 + $0x30] sm:$0xf]
      %v61 = vld [vmem:[%s1 + $0x34] sm:$0xf]
      %v62 = vld [vmem:[%s1 + $0x38] sm:$0xf]
      %v63 = vld [vmem:[%s1 + $0x3c] sm:$0xf]
      %v64 = vld [vmem:[%s2] sm:$0x1]
      %v66 = vlaneseq
      %v67 = vshrl.u32 %v66, 7
      %v68 = vsub.s32 0, %v67
      %v69 = vrot.slane %v64, %v68
      %v87 = vunpack.c.l.b16 %v48
      %v88 = vunpack.c.l.b16 %v49
      %v89 = vunpack.c.l.b16 %v50
      %v90 = vunpack.c.l.b16 %v51
      %v91 = vunpack.c.l.b16 %v52
      %v92 = vunpack.c.l.b16 %v53
      %v93 = vunpack.c.l.b16 %v54
      %v94 = vunpack.c.l.b16 %v55
      %v95 = vunpack.c.l.b16 %v56
      %v96 = vunpack.c.l.b16 %v57
      %v97 = vunpack.c.l.b16 %v58
      %v98 = vunpack.c.l.b16 %v59
      %v99 = vunpack.c.l.b16 %v60
      %v100 = vunpack.c.l.b16 %v61
      %v101 = vunpack.c.l.b16 %v62
      %v102 = vunpack.c.l.b16 %v63
      %v103 = vpack.c.b16 %v88, %v87
      %v104 = vpack.c.b16 %v90, %v89
      %v105 = vpack.c.b16 %v92, %v91
      %v106 = vpack.c.b16 %v94, %v93
      %v107 = vpack.c.b16 %v96, %v95
      %v108 = vpack.c.b16 %v98, %v97
      %v109 = vpack.c.b16 %v100, %v99
      %v110 = vpack.c.b16 %v102, %v101
      %119 = vmatprep.subr.bf16.mxu0 0
      %120 = vmatpush1.bf16.msra.mxu0 %v103
      %121 = vmatprep.subr.bf16.mxu0 0
      %122 = vmatpush1.bf16.msra.mxu0 %v104
      %123 = vmatprep.subr.bf16.mxu0 0
      %124 = vmatpush1.bf16.msra.mxu0 %v105
      %125 = vmatprep.subr.bf16.mxu0 0
      %126 = vmatpush1.bf16.msra.mxu0 %v106
      %127 = vmatprep.subr.bf16.mxu0 0
      %128 = vmatpush1.bf16.msra.mxu0 %v107
      %129 = vmatprep.subr.bf16.mxu0 0
      %130 = vmatpush1.bf16.msra.mxu0 %v108
      %131 = vmatprep.subr.bf16.mxu0 0
      %132 = vmatpush1.bf16.msra.mxu0 %v109
      %133 = vmatprep.subr.bf16.mxu0 0
      %134 = vmatpush1.bf16.msra.mxu0 %v110
      %135 = vmatprep.subr.bf16.mxu0 0
      %136 = vmatpush1.bf16.msra.mxu0 0
      %137 = vmatprep.subr.bf16.mxu0 0
      %138 = vmatpush1.bf16.msra.mxu0 0
      %139 = vmatprep.subr.bf16.mxu0 0
      %140 = vmatpush1.bf16.msra.mxu0 0
      %141 = vmatprep.subr.bf16.mxu0 0
      %142 = vmatpush1.bf16.msra.mxu0 0
      %143 = vmatprep.subr.bf16.mxu0 0
      %144 = vmatpush1.bf16.msra.mxu0 0
      %145 = vmatprep.subr.bf16.mxu0 0
      %146 = vmatpush1.bf16.msra.mxu0 0
      %147 = vmatprep.subr.bf16.mxu0 0
      %148 = vmatpush1.bf16.msra.mxu0 0
      %149 = vmatprep.subr.bf16.mxu0 0
      %150 = vmatpush1.bf16.msra.mxu0 0
      %151 = vmatprep.mubr.bf16.mxu0 0
      %152 = vmatmul.mubr.bf16.gmra.mrb[0].mxu0 %v47
      %v153 = vpop.f32.mrb[0].mxu0
      %v154 = vadd.f32 %v69, %v153
      %v155 = vpop.f32.mrb[0].mxu0
      %v156 = vpop.f32.mrb[0].mxu0
      %v157 = vpop.f32.mrb[0].mxu0
      %158 = vdwg.mxu0
      %v159 = vmax.f32 %v154, 0.0
      %v160 = vpack.c.bf16 %v159, %v159
      %v161 = vld [vmem:[%s3] sm:$0xf]
      %v162 = vld [vmem:[%s3 + $0x4] sm:$0xf]
      %v163 = vld [vmem:[%s3 + $0x8] sm:$0xf]
      %v164 = vld [vmem:[%s3 + $0xc] sm:$0xf]
      %v165 = vld [vmem:[%s3 + $0x10] sm:$0xf]
      %v166 = vld [vmem:[%s3 + $0x14] sm:$0xf]
      %v167 = vld [vmem:[%s3 + $0x18] sm:$0xf]
      %v168 = vld [vmem:[%s3 + $0x1c] sm:$0xf]
      %v169 = vld [vmem:[%s4] sm:$0x1]
      %v171 = vlaneseq
      %v172 = vshrl.u32 %v171, 7
      %v173 = vsub.s32 0, %v172
      %v174 = vrot.slane %v169, %v173
      %v184 = vunpack.c.l.b16 %v161
      %v185 = vunpack.c.l.b16 %v162
      %v186 = vunpack.c.l.b16 %v163
      %v187 = vunpack.c.l.b16 %v164
      %v188 = vunpack.c.l.b16 %v165
      %v189 = vunpack.c.l.b16 %v166
      %v190 = vunpack.c.l.b16 %v167
      %v191 = vunpack.c.l.b16 %v168
      %v192 = vpack.c.b16 %v185, %v184
      %v193 = vpack.c.b16 %v187, %v186
      %v194 = vpack.c.b16 %v189, %v188
      %v195 = vpack.c.b16 %v191, %v190
      %vm200 = vcmask 523264
      %v202 = vsel %vm200, %v160, 0
      %204 = vmatprep.subr.bf16.mxu0 0
      %205 = vmatpush1.bf16.msra.mxu0 %v192
      %206 = vmatprep.subr.bf16.mxu0 0
      %207 = vmatpush1.bf16.msra.mxu0 %v193
      %208 = vmatprep.subr.bf16.mxu0 0
      %209 = vmatpush1.bf16.msra.mxu0 %v194
      %210 = vmatprep.subr.bf16.mxu0 0
      %211 = vmatpush1.bf16.msra.mxu0 %v195
      %212 = vmatprep.subr.bf16.mxu0 0
      %213 = vmatpush1.bf16.msra.mxu0 0
      %214 = vmatprep.subr.bf16.mxu0 0
      %215 = vmatpush1.bf16.msra.mxu0 0
      %216 = vmatprep.subr.bf16.mxu0 0
      %217 = vmatpush1.bf16.msra.mxu0 0
      %218 = vmatprep.subr.bf16.mxu0 0
      %219 = vmatpush1.bf16.msra.mxu0 0
      %220 = vmatprep.subr.bf16.mxu0 0
      %221 = vmatpush1.bf16.msra.mxu0 0
      %222 = vmatprep.subr.bf16.mxu0 0
      %223 = vmatpush1.bf16.msra.mxu0 0
      %224 = vmatprep.subr.bf16.mxu0 0
      %225 = vmatpush1.bf16.msra.mxu0 0
      %226 = vmatprep.subr.bf16.mxu0 0
      %227 = vmatpush1.bf16.msra.mxu0 0
      %228 = vmatprep.subr.bf16.mxu0 0
      %229 = vmatpush1.bf16.msra.mxu0 0
      %230 = vmatprep.subr.bf16.mxu0 0
      %231 = vmatpush1.bf16.msra.mxu0 0
      %232 = vmatprep.subr.bf16.mxu0 0
      %233 = vmatpush1.bf16.msra.mxu0 0
      %234 = vmatprep.subr.bf16.mxu0 0
      %235 = vmatpush1.bf16.msra.mxu0 0
      %236 = vmatprep.mubr.bf16.mxu0 0
      %237 = vmatmul.mubr.bf16.gmra.mrb[0].mxu0 %v202
      %v238 = vpop.f32.mrb[0].mxu0
      %v239 = vadd.f32 %v174, %v238
      %v240 = vpop.f32.mrb[0].mxu0
      %v241 = vpop.f32.mrb[0].mxu0
      %v242 = vpop.f32.mrb[0].mxu0
      %243 = vdwg.mxu0
      %v244 = vmax.f32 %v239, 0.0
      %v245 = vpack.c.bf16 %v244, %v244
      %v246 = vld [vmem:[%s5] sm:$0xf]
      %v247 = vld [vmem:[%s5 + $0x4] sm:$0xf]
      %v248 = vld [vmem:[%s5 + $0x8] sm:$0xf]
      %v249 = vld [vmem:[%s5 + $0xc] sm:$0xf]
      %v250 = vld [vmem:[%s5 + $0x10] sm:$0xf]
      %v251 = vld [vmem:[%s5 + $0x14] sm:$0xf]
      %v252 = vld [vmem:[%s5 + $0x18] sm:$0xf]
      %v253 = vld [vmem:[%s5 + $0x1c] sm:$0xf]
      %v254 = vld [vmem:[%s6] sm:$0x1]
      %v256 = vlaneseq
      %v257 = vshrl.u32 %v256, 7
      %v258 = vsub.s32 0, %v257
      %v259 = vrot.slane %v254, %v258
      %v269 = vunpack.c.l.b16 %v246
      %v270 = vunpack.c.l.b16 %v247
      %v271 = vunpack.c.l.b16 %v248
      %v272 = vunpack.c.l.b16 %v249
      %v273 = vunpack.c.l.b16 %v250
      %v274 = vunpack.c.l.b16 %v251
      %v275 = vunpack.c.l.b16 %v252
      %v276 = vunpack.c.l.b16 %v253
      %v277 = vpack.c.b16 %v270, %v269
      %v278 = vpack.c.b16 %v272, %v271
      %v279 = vpack.c.b16 %v274, %v273
      %v280 = vpack.c.b16 %v276, %v275
      %v286 = vsel %vm200, %v245, 0
      %288 = vmatprep.subr.bf16.mxu0 0
      %289 = vmatpush1.bf16.msra.mxu0 %v277
      %290 = vmatprep.subr.bf16.mxu0 0
      %291 = vmatpush1.bf16.msra.mxu0 %v278
      %292 = vmatprep.subr.bf16.mxu0 0
      %293 = vmatpush1.bf16.msra.mxu0 %v279
      %294 = vmatprep.subr.bf16.mxu0 0
      %295 = vmatpush1.bf16.msra.mxu0 %v280
      %296 = vmatprep.subr.bf16.mxu0 0
      %297 = vmatpush1.bf16.msra.mxu0 0
      %298 = vmatprep.subr.bf16.mxu0 0
      %299 = vmatpush1.bf16.msra.mxu0 0
      %300 = vmatprep.subr.bf16.mxu0 0
      %301 = vmatpush1.bf16.msra.mxu0 0
      %302 = vmatprep.subr.bf16.mxu0 0
      %303 = vmatpush1.bf16.msra.mxu0 0
      %304 = vmatprep.subr.bf16.mxu0 0
      %305 = vmatpush1.bf16.msra.mxu0 0
      %306 = vmatprep.subr.bf16.mxu0 0
      %307 = vmatpush1.bf16.msra.mxu0 0
      %308 = vmatprep.subr.bf16.mxu0 0
      %309 = vmatpush1.bf16.msra.mxu0 0
      %310 = vmatprep.subr.bf16.mxu0 0
      %311 = vmatpush1.bf16.msra.mxu0 0
      %312 = vmatprep.subr.bf16.mxu0 0
      %313 = vmatpush1.bf16.msra.mxu0 0
      %314 = vmatprep.subr.bf16.mxu0 0
      %315 = vmatpush1.bf16.msra.mxu0 0
      %316 = vmatprep.subr.bf16.mxu0 0
      %317 = vmatpush1.bf16.msra.mxu0 0
      %318 = vmatprep.subr.bf16.mxu0 0
      %319 = vmatpush1.bf16.msra.mxu0 0
      %320 = vmatprep.mubr.bf16.mxu0 0
      %321 = vmatmul.mubr.bf16.gmra.mrb[0].mxu0 %v286
      %v322 = vpop.f32.mrb[0].mxu0
      %v323 = vadd.f32 %v259, %v322
      %v324 = vpop.f32.mrb[0].mxu0
      %v325 = vpop.f32.mrb[0].mxu0
      %v326 = vpop.f32.mrb[0].mxu0
      %327 = vdwg.mxu0
      %v328 = vmin.f32 %v323, 20.0
      %v329 = vmul.f32 %v328, 1.442695
      %v330 = vpow.pop %v329
      %vm331 = vcmp.gt.f32.partialorder %v323, 20.0
      %v332 = vadd.f32 %v330, 1.0
      %v333 = vlog2.pop %v332
      %v334 = vmul.f32 %v333, 0.6931472
      %v335 = vmul.f32 -0.5, %v330
      %v336 = vadd.f32 %v335, 1.0
      %v337 = vmul.f32 %v336, %v330
      %v338 = vand.u32 2147483647, %v330
      %vm339 = vcmp.lt.f32.partialorder %v338, 0.0004427343
      %v340 = vsel %vm339, %v337, %v334
      %v341 = vsel %vm331, %v323, %v340
      %v342 = vtanh.pop %v323
      %v343 = vld [vmem:[%s9] sm:$0xff]
      %345 = vrot.lane.b32.xlu0 %v343, 112
      %v346 = vpop.permute.xlu0 %345
      %v348 = vmul.f32 %v342, %v346
      %v349 = vadd.f32 %v348, 0.0
      %351 = vrot.lane.b32.xlu0 %v341, 112
      %v352 = vpop.permute.xlu0 %351
      %v354 = vmul.f32 %v343, %v352
      %v355 = vadd.f32 %v323, %v354
      %357 = vrot.lane.b32.xlu0 %v349, 96
      %v358 = vpop.permute.xlu0 %357
      %v360 = vadd.f32 %v355, %v358
      %vm361 = vcmp.gt.f32.partialorder %v360, %v346
      %v362 = vsel %vm361, 1, 0
      %v363 = vcvt.s32.f32 %v362
      %364 = vrot.lane.b32.xlu0 %v343, 96
      %v365 = vpop.permute.xlu0 %364
      %v367 = vadd.f32 %v363, %v365
      %v368 = vpack.c.bf16 %v367, %v367
      %vm369 = vcmask 125952
      %370 = vst.msk [vmem:[#allocation2] sm:$0xf] %vm369, %v368
      %372 = vrot.lane.b32.xlu0 %v323, 16
      %v373 = vpop.permute.xlu0 %372
      %375 = vrot.lane.b32.xlu0 %v341, 16
      %v376 = vpop.permute.xlu0 %375
      %379 = vrot.lane.b32.xlu0 %v342, 16
      %v380 = vpop.permute.xlu0 %379
      %vm382 = vcmask 130048
      %v383 = vsel %vm382, %v363, %v373
      %vm384 = vcmask 261120
      %v385 = vsel %vm384, %v383, %v376
      %vm386 = vcmask 392192
      %v387 = vsel %vm386, %v385, %v380
      %v388 = vsel %vm200, %v387, 0.0
      %389 = vst [vmem:[#allocation5] sm:$0xff] %v388
    $region45: #{tpu_custom_call.1} parent=1 // pred_fallthru
      _
    %v390 = vld [vmem:[#allocation2] sm:$0xf]
    %v391 = vld [vmem:[%s7] sm:$0xf]
    %v392 = vld [vmem:[%s7 + $0x4] sm:$0xf]
    %v393 = vld [vmem:[%s8] sm:$0x1]
    %v395 = vlaneseq
    %v396 = vshrl.u32 %v395, 7
    %v397 = vsub.s32 0, %v396
    %v398 = vrot.slane %v393, %v397
    %v402 = vunpack.c.l.b16 %v391
    %v403 = vunpack.c.l.b16 %v392
    %v404 = vpack.c.b16 %v403, %v402
    %vm406 = vcmask 130048
    %v408 = vsel %vm406, %v390, 0
    %410 = vmatprep.subr.bf16.mxu0 0
    %411 = vmatpush1.bf16.msra.mxu0 %v404
    %412 = vmatprep.subr.bf16.mxu0 0
    %413 = vmatpush1.bf16.msra.mxu0 0
    %414 = vmatprep.subr.bf16.mxu0 0
    %415 = vmatpush1.bf16.msra.mxu0 0
    %416 = vmatprep.subr.bf16.mxu0 0
    %417 = vmatpush1.bf16.msra.mxu0 0
    %418 = vmatprep.subr.bf16.mxu0 0
    %419 = vmatpush1.bf16.msra.mxu0 0
    %420 = vmatprep.subr.bf16.mxu0 0
    %421 = vmatpush1.bf16.msra.mxu0 0
    %422 = vmatprep.subr.bf16.mxu0 0
    %423 = vmatpush1.bf16.msra.mxu0 0
    %424 = vmatprep.subr.bf16.mxu0 0
    %425 = vmatpush1.bf16.msra.mxu0 0
    %426 = vmatprep.subr.bf16.mxu0 0
    %427 = vmatpush1.bf16.msra.mxu0 0
    %428 = vmatprep.subr.bf16.mxu0 0
    %429 = vmatpush1.bf16.msra.mxu0 0
    %430 = vmatprep.subr.bf16.mxu0 0
    %431 = vmatpush1.bf16.msra.mxu0 0
    %432 = vmatprep.subr.bf16.mxu0 0
    %433 = vmatpush1.bf16.msra.mxu0 0
    %434 = vmatprep.subr.bf16.mxu0 0
    %435 = vmatpush1.bf16.msra.mxu0 0
    %436 = vmatprep.subr.bf16.mxu0 0
    %437 = vmatpush1.bf16.msra.mxu0 0
    %438 = vmatprep.subr.bf16.mxu0 0
    %439 = vmatpush1.bf16.msra.mxu0 0
    %440 = vmatprep.subr.bf16.mxu0 0
    %441 = vmatpush1.bf16.msra.mxu0 0
    %442 = vmatprep.mubr.bf16.mxu0 0
    %443 = vmatmul.mubr.bf16.gmra.mrb[0].mxu0 %v408
    %v444 = vpop.f32.mrb[0].mxu0
    %v445 = vadd.f32 %v398, %v444
    %v446 = vpop.f32.mrb[0].mxu0
    %v447 = vpop.f32.mrb[0].mxu0
    %v448 = vpop.f32.mrb[0].mxu0
    %449 = vdwg.mxu0
    %450 = vmax.xlane.f32.xlu0 %v445
    %v451 = vpop.xlane.xlu0 %450
    %v452 = vsub.f32 %v445, %v451
    %v453 = vmul.f32 %v452, 1.442695
    %v454 = vpow.pop %v453
    %455 = vadd.xlane.f32.xlu0 %v454
    %v456 = vpop.xlane.xlu0 %455
    %v457 = vlog2.pop %v456
    %v458 = vmul.f32 %v457, 0.6931472
    %v459 = vadd.f32 %v451, %v458
    %v460 = vsub.f32 %v445, %v459
    %v461 = vpack.c.bf16 %v460, %v460
    %462 = vst [vmem:[#allocation7] sm:$0xf] %v461
    // Predicated region
    $region46: #{tpu_custom_call.1} parent=1 // pred_check
      _
    $region47: #{tpu_custom_call.1} parent=1 // pred_check_branch
      %464 = sbr.rel (0) target = $region49
    $region48: #{tpu_custom_call.1} parent=1 // pred_region
      %s466 = ssub.s32 128, 128
      %467 = vsyncadd [#allocation6], %s466
      %s469 = sshll.u32 [#allocation5], 4
      %s470 = int_to_ptr.vmem [resolvable:$true] %s469
      %472 = dma.vmem_to_hbm [thread:$0]  %s470, 128, %s10, [#allocation6]
    $region49: #{tpu_custom_call.1} parent=1 // pred_fallthru
      _
    // Predicated region
    $region50: #{tpu_custom_call.1} parent=1 // pred_check
      _
    $region51: #{tpu_custom_call.1} parent=1 // pred_check_branch
      %474 = sbr.rel (0) target = $region53
    $region52: #{tpu_custom_call.1} parent=1 // pred_region
      %s475 = ssub.s32 0, 1
      %p476 = scmp.gt.s32.totalorder %s475, 0
      %s477 = scalar_select %p476, %s475, 0
      %s479 = ssub.s32 64, 64
      %480 = vsyncadd [#allocation8], %s479
      %s481 = smul.addr %s477, 64
      %s482 = scalar_lea.hbm %s11, %s481
      %s484 = sshll.u32 [#allocation7], 4
      %s485 = int_to_ptr.vmem [resolvable:$true] %s484
      %487 = dma.vmem_to_hbm [thread:$0]  %s485, 64, %s482, [#allocation8]
    $region53: #{tpu_custom_call.1} parent=1 // pred_fallthru
      _
    // Predicated region
    $region54: #{tpu_custom_call.1} parent=1 // pred_check
      _
    $region55: #{tpu_custom_call.1} parent=1 // pred_check_branch
      %489 = sbr.rel (0) target = $region57
    $region56: #{tpu_custom_call.1} parent=1 // pred_region
      %490 = dma.done [#allocation6], 128
    $region57: #{tpu_custom_call.1} parent=1 // pred_fallthru
      _
    // Predicated region
    $region58: #{tpu_custom_call.1} parent=1 // pred_check
      _
    $region59: #{tpu_custom_call.1} parent=1 // pred_check_branch
      %492 = sbr.rel (0) target = $region61
    $region60: #{tpu_custom_call.1} parent=1 // pred_region
      %493 = dma.done [#allocation8], 64
    $region61: #{tpu_custom_call.1} parent=1 // pred_fallthru
      _
    %494 = vsyncpa [#allocation6], 1
    %495 = vsyncpa [#allocation8], 1

</llo_original>
